<compile_context>
chip_gen: v7x
topology: tpu7x:2x2x1
jax: 0.10.0
libtpu: 0.0.40
codegen_flags: <defaults>
</compile_context>

<pallas_src>
import jax
import jax.numpy as jnp
from jax.experimental import pallas as pl
from jax.experimental.pallas import tpu as pltpu


def _ceil_to(x, m):
    return (x + m - 1) // m * m


# ----------------------------------------------------------------------------
# Parameter packing: all weights + biases -> one 2-D f32 slab (one DMA).
# Every segment is padded to 128-aligned rows/cols so all in-kernel slices are
# (8,128)-tile aligned and all matmuls are lane-dense.
# ----------------------------------------------------------------------------
def pack_params(params, n_agents, obs_shape, hid_size, max_group=4):
    A, H, MG = n_agents, hid_size, max_group
    AO, H2, AH, AMG = A * obs_shape, 2 * H, A * H, A * MG
    AOp, H2p, Hp, AHp, AMGp = (_ceil_to(v, 128) for v in (AO, H2, H, AH, AMG))

    eye_a = jnp.eye(A, dtype=jnp.float32)

    def padded(m, rows, cols):
        out = jnp.zeros((rows, cols), jnp.float32)
        return out.at[: m.shape[0], : m.shape[1]].set(m)

    # group-indicator: block-diag ones(MG,MG) for real lanes, identity for the
    # pad lanes (keeps log(sum) finite there; pad lanes are sliced off anyway).
    g = jnp.eye(AMGp, dtype=jnp.float32)
    g = g.at[:AMG, :AMG].set(jnp.kron(eye_a, jnp.ones((MG, MG), jnp.float32)))

    mats = [
        ("w1",    padded(params["w1"], AOp, H2p)),                       # fc1
        ("w2",    padded(params["w2"], H2p, Hp)),                        # fc2
        ("w3bd",  padded(jnp.kron(eye_a, params["w3"]), AOp, AHp)),      # fc3 block-diag
        ("w4abd", padded(jnp.kron(eye_a, params["w4a"]), AHp, AHp)),     # fc4 (x part)
        ("w4bt",  padded(jnp.tile(params["w4b"], (1, A)), Hp, AHp)),     # fc4 (z part)
        ("wabd",  padded(jnp.kron(eye_a, params["wa"]), AHp, AMGp)),     # action head
        ("g",     g),
    ]
    biases = [
        padded(params["b1"], 1, H2p),
        padded(params["b2"], 1, Hp),
        padded(jnp.tile(params["b3"], (1, A)), 1, AHp),
        padded(jnp.tile(params["b4"], (1, A)), 1, AHp),
        padded(jnp.tile(params["ba"], (1, A)), 1, AMGp),
    ]

    width = max(H2p, Hp, AHp, AMGp)
    offs, rows = {}, 0
    for name, m in mats:
        offs[name] = rows
        rows += m.shape[0]                      # each is already a multiple of 128
    offs["bias"] = rows
    rows = _ceil_to(rows + len(biases), 8)

    slab = jnp.zeros((rows, width), jnp.float32)
    for name, m in mats:
        slab = slab.at[offs[name]:offs[name] + m.shape[0], : m.shape[1]].set(m)
    for i, b in enumerate(biases):
        slab = slab.at[offs["bias"] + i, : b.shape[1]].set(b[0])

    meta = dict(n_agents=A, obs_shape=obs_shape, hid_size=H, max_group=MG,
                offs=offs,
                dims=dict(AO=AO, AOp=AOp, H2p=H2p, Hp=Hp, AHp=AHp,
                          AMG=AMG, AMGp=AMGp))
    return slab, meta


# ----------------------------------------------------------------------------
# Kernel
# ----------------------------------------------------------------------------
def _make_kernel(meta):
    d, o = meta["dims"], meta["offs"]
    AOp, H2p, Hp, AHp, AMGp = d["AOp"], d["H2p"], d["Hp"], d["AHp"], d["AMGp"]

    def kernel(xf_ref, p_ref, out_ref):
        xf = xf_ref[...]                                         # (Bblk, AOp)

        b1  = p_ref[o["bias"] + 0:o["bias"] + 1, 0:H2p]
        b2  = p_ref[o["bias"] + 1:o["bias"] + 2, 0:Hp]
        b3t = p_ref[o["bias"] + 2:o["bias"] + 3, 0:AHp]
        b4t = p_ref[o["bias"] + 3:o["bias"] + 4, 0:AHp]
        bat = p_ref[o["bias"] + 4:o["bias"] + 5, 0:AMGp]

        # shared "message" branch: fc1 -> fc2 on the flattened observation
        w1 = p_ref[o["w1"]:o["w1"] + AOp, 0:H2p]
        h = jnp.tanh(jnp.dot(xf, w1, preferred_element_type=jnp.float32) + b1)
        w2 = p_ref[o["w2"]:o["w2"] + H2p, 0:Hp]
        z = jnp.tanh(jnp.dot(h, w2, preferred_element_type=jnp.float32) + b2)
        # z's fc4 contribution, replicated into every agent's column group
        w4bt = p_ref[o["w4bt"]:o["w4bt"] + Hp, 0:AHp]
        zc = jnp.dot(z, w4bt, preferred_element_type=jnp.float32)  # (Bblk, AHp)

        # per-agent branch, all agents at once via block-diagonal weights
        w3bd = p_ref[o["w3bd"]:o["w3bd"] + AOp, 0:AHp]
        xe = jnp.tanh(jnp.dot(xf, w3bd, preferred_element_type=jnp.float32) + b3t)
        w4abd = p_ref[o["w4abd"]:o["w4abd"] + AHp, 0:AHp]
        xh = jnp.tanh(jnp.dot(xe, w4abd, preferred_element_type=jnp.float32)
                      + zc + b4t)                                  # (Bblk, AHp)

        # action head + per-agent (group of MG lanes) log_softmax
        wabd = p_ref[o["wabd"]:o["wabd"] + AHp, 0:AMGp]
        logits = jnp.dot(xh, wabd, preferred_element_type=jnp.float32) + bat
        m = jnp.max(logits, axis=-1, keepdims=True)   # any per-row shift is valid
        s = logits - m
        g = p_ref[o["g"]:o["g"] + AMGp, 0:AMGp]       # group-indicator matrix
        sum_grp = jnp.dot(jnp.exp(s), g, preferred_element_type=jnp.float32)
        out_ref[...] = s - jnp.log(sum_grp)

    return kernel


# ----------------------------------------------------------------------------
# Wrappers
# ----------------------------------------------------------------------------
def teaming_forward_batched(xb, param_slab, meta, block_b=256):
    """xb: (B, n_agents, obs_shape) f32 -> (B, n_agents, max_group) log-probs."""
    A, MG = meta["n_agents"], meta["max_group"]
    d = meta["dims"]
    AO, AOp, AMG, AMGp = d["AO"], d["AOp"], d["AMG"], d["AMGp"]
    B = xb.shape[0]

    xf = xb.reshape(B, AO).astype(jnp.float32)       # flatten done in the wrapper
    bblk = min(block_b, _ceil_to(B, 8))
    b_pad = _ceil_to(B, bblk)
    pad_rows, pad_cols = b_pad - B, AOp - AO
    if pad_rows or pad_cols:
        xf = jnp.pad(xf, ((0, pad_rows), (0, pad_cols)))

    rows, width = param_slab.shape
    out = pl.pallas_call(
        _make_kernel(meta),
        out_shape=jax.ShapeDtypeStruct((b_pad, AMGp), jnp.float32),
        grid=(b_pad // bblk,),
        in_specs=[
            pl.BlockSpec((bblk, AOp), lambda i: (i, 0)),     # batch-blocked input
            pl.BlockSpec((rows, width), lambda i: (0, 0)),   # resident param slab
        ],
        out_specs=pl.BlockSpec((bblk, AMGp), lambda i: (i, 0)),  # lane-dense out
        compiler_params=pltpu.CompilerParams(
            dimension_semantics=("parallel",)),
    )(xf, param_slab)
    return out[:B, :AMG].reshape(B, A, MG)


def teaming_forward(x, param_slab, meta):
    """Module-equivalent single forward: x (n_agents, obs_shape)."""
    return teaming_forward_batched(x[None], param_slab, meta)[0]


# ----------------------------------------------------------------------------
# Parameters + pure-JAX reference
# ----------------------------------------------------------------------------
def init_params(key, n_agents, obs_shape, hid_size, max_group=4):
    """Deterministic synthetic parameters (PyTorch-Linear init, stored (in,out))."""
    def lin(k, fan_in, fan_out):
        kw, kb = jax.random.split(k)
        bound = 1.0 / jnp.sqrt(fan_in)
        w = jax.random.uniform(kw, (fan_in, fan_out), jnp.float32, -bound, bound)
        b = jax.random.uniform(kb, (1, fan_out), jnp.float32, -bound, bound)
        return w, b

    keys = jax.random.split(key, 5)
    w1, b1 = lin(keys[0], obs_shape * n_agents, hid_size * 2)   # fc1
    w2, b2 = lin(keys[1], hid_size * 2, hid_size)               # fc2
    w3, b3 = lin(keys[2], obs_shape, hid_size)                  # fc3
    w4, b4 = lin(keys[3], hid_size * 2, hid_size)               # fc4
    wa, ba = lin(keys[4], hid_size, max_group)                  # action_head
    return {
        "w1": w1, "b1": b1,
        "w2": w2, "b2": b2,
        "w3": w3, "b3": b3,
        "w4a": w4[:hid_size], "w4b": w4[hid_size:], "b4": b4,
        "wa": wa, "ba": ba,
    }


def teaming_ref(x, params):
    """Pure-JAX reference mirroring the PyTorch forward exactly."""
    n_agents = x.shape[0]
    h = jnp.tanh(x.reshape(1, -1) @ params["w1"] + params["b1"])
    z = jnp.tanh(h @ params["w2"] + params["b2"])
    xe = jnp.tanh(x @ params["w3"] + params["b3"])
    w4 = jnp.concatenate([params["w4a"], params["w4b"]], axis=0)
    xh = jnp.concatenate([xe, jnp.tile(z, (n_agents, 1))], axis=-1)
    xh = jnp.tanh(xh @ w4 + params["b4"])
    logits = xh @ params["wa"] + params["ba"]
    return jax.nn.log_softmax(logits, axis=-1)


if __name__ == "__main__":
    n_agents, obs_shape, hid_size, max_group = 8, 16, 32, 4
    batch = 256

    key = jax.random.PRNGKey(0)
    k_x, k_p = jax.random.split(key)
    xb = jax.random.normal(k_x, (batch, n_agents, obs_shape), jnp.float32)
    params = init_params(k_p, n_agents, obs_shape, hid_size, max_group)
    slab, meta = pack_params(params, n_agents, obs_shape, hid_size, max_group)

    out = jax.block_until_ready(teaming_forward_batched(xb, slab, meta))
    assert out.shape == (batch, n_agents, max_group)

    ref = jax.vmap(lambda x: teaming_ref(x, params))(xb)
    err = float(jnp.max(jnp.abs(out - ref)))
    assert jnp.allclose(out, ref, atol=1e-4, rtol=1e-4), f"mismatch: {err}"

    # single-sample path == original module forward()
    out1 = jax.block_until_ready(teaming_forward(xb[0], slab, meta))
    assert out1.shape == (n_agents, max_group)
    assert jnp.allclose(out1, ref[0], atol=1e-4, rtol=1e-4)

    print("KERNEL_OK")
</pallas_src>

<mosaic_0001>
module attributes {stable_mosaic.version = 11 : i64} {
  func.func @kernel(%arg0: i32, %arg1: memref<256x128xf32, #tpu.memory_space<vmem>>, %arg2: memref<1160x256xf32, #tpu.memory_space<vmem>>, %arg3: memref<256x128xf32, #tpu.memory_space<vmem>>) attributes {dimension_semantics = [#tpu.dimension_semantics<parallel>], iteration_bounds = array<i64: 1>, scalar_prefetch = 0 : i64, scratch_operands = 0 : i64, tpu.core_type = #tpu.core_type<tc>, window_params = [{transform_indices = @transform_0, window_bounds = array<i64: 256, 128>}, {pipeline_mode = #tpu.pipeline_mode<synchronous>, transform_indices = @transform_1, window_bounds = array<i64: 1160, 256>}, {transform_indices = @transform_2, window_bounds = array<i64: 256, 128>}]} {
    %c0 = arith.constant 0 : index
    %c0_0 = arith.constant 0 : index
    %0 = vector.load %arg1[%c0, %c0_0] : memref<256x128xf32, #tpu.memory_space<vmem>>, vector<256x128xf32>
    %c1152 = arith.constant 1152 : index
    %c0_1 = arith.constant 0 : index
    %1 = vector.load %arg2[%c1152, %c0_1] : memref<1160x256xf32, #tpu.memory_space<vmem>>, vector<1x128xf32>
    %c1153 = arith.constant 1153 : index
    %c0_2 = arith.constant 0 : index
    %2 = vector.load %arg2[%c1153, %c0_2] : memref<1160x256xf32, #tpu.memory_space<vmem>>, vector<1x128xf32>
    %c1154 = arith.constant 1154 : index
    %c0_3 = arith.constant 0 : index
    %3 = vector.load %arg2[%c1154, %c0_3] : memref<1160x256xf32, #tpu.memory_space<vmem>>, vector<1x256xf32>
    %c1155 = arith.constant 1155 : index
    %c0_4 = arith.constant 0 : index
    %4 = vector.load %arg2[%c1155, %c0_4] : memref<1160x256xf32, #tpu.memory_space<vmem>>, vector<1x256xf32>
    %c1156 = arith.constant 1156 : index
    %c0_5 = arith.constant 0 : index
    %5 = vector.load %arg2[%c1156, %c0_5] : memref<1160x256xf32, #tpu.memory_space<vmem>>, vector<1x128xf32>
    %c0_6 = arith.constant 0 : index
    %c0_7 = arith.constant 0 : index
    %6 = vector.load %arg2[%c0_6, %c0_7] : memref<1160x256xf32, #tpu.memory_space<vmem>>, vector<128x128xf32>
    %cst = arith.constant dense<0.000000e+00> : vector<256x128xf32>
    %7 = tpu.matmul %0, %6, %cst {dimension_numbers = #tpu.dot_dimension_numbers<[1], [0], [0], [1], [0, 0, 1, 1], [], []>} : vector<256x128xf32>, vector<128x128xf32>, vector<256x128xf32> -> vector<256x128xf32>
    %8 = vector.broadcast %1 : vector<1x128xf32> to vector<256x128xf32>
    %9 = arith.addf %7, %8 : vector<256x128xf32>
    %10 = math.tanh %9 : vector<256x128xf32>
    %c128 = arith.constant 128 : index
    %c0_8 = arith.constant 0 : index
    %11 = vector.load %arg2[%c128, %c0_8] : memref<1160x256xf32, #tpu.memory_space<vmem>>, vector<128x128xf32>
    %cst_9 = arith.constant dense<0.000000e+00> : vector<256x128xf32>
    %12 = tpu.matmul %10, %11, %cst_9 {dimension_numbers = #tpu.dot_dimension_numbers<[1], [0], [0], [1], [0, 0, 1, 1], [], []>} : vector<256x128xf32>, vector<128x128xf32>, vector<256x128xf32> -> vector<256x128xf32>
    %13 = vector.broadcast %2 : vector<1x128xf32> to vector<256x128xf32>
    %14 = arith.addf %12, %13 : vector<256x128xf32>
    %15 = math.tanh %14 : vector<256x128xf32>
    %c640 = arith.constant 640 : index
    %c0_10 = arith.constant 0 : index
    %16 = vector.load %arg2[%c640, %c0_10] : memref<1160x256xf32, #tpu.memory_space<vmem>>, vector<128x256xf32>
    %cst_11 = arith.constant dense<0.000000e+00> : vector<256x256xf32>
    %17 = tpu.matmul %15, %16, %cst_11 {dimension_numbers = #tpu.dot_dimension_numbers<[1], [0], [0], [1], [0, 0, 1, 1], [], []>} : vector<256x128xf32>, vector<128x256xf32>, vector<256x256xf32> -> vector<256x256xf32>
    %c256 = arith.constant 256 : index
    %c0_12 = arith.constant 0 : index
    %18 = vector.load %arg2[%c256, %c0_12] : memref<1160x256xf32, #tpu.memory_space<vmem>>, vector<128x256xf32>
    %cst_13 = arith.constant dense<0.000000e+00> : vector<256x256xf32>
    %19 = tpu.matmul %0, %18, %cst_13 {dimension_numbers = #tpu.dot_dimension_numbers<[1], [0], [0], [1], [0, 0, 1, 1], [], []>} : vector<256x128xf32>, vector<128x256xf32>, vector<256x256xf32> -> vector<256x256xf32>
    %20 = vector.broadcast %3 : vector<1x256xf32> to vector<256x256xf32>
    %21 = arith.addf %19, %20 : vector<256x256xf32>
    %22 = math.tanh %21 : vector<256x256xf32>
    %c384 = arith.constant 384 : index
    %c0_14 = arith.constant 0 : index
    %23 = vector.load %arg2[%c384, %c0_14] : memref<1160x256xf32, #tpu.memory_space<vmem>>, vector<256x256xf32>
    %cst_15 = arith.constant dense<0.000000e+00> : vector<256x256xf32>
    %24 = tpu.matmul %22, %23, %cst_15 {dimension_numbers = #tpu.dot_dimension_numbers<[1], [0], [0], [1], [0, 0, 1, 1], [], []>} : vector<256x256xf32>, vector<256x256xf32>, vector<256x256xf32> -> vector<256x256xf32>
    %25 = arith.addf %24, %17 : vector<256x256xf32>
    %26 = vector.broadcast %4 : vector<1x256xf32> to vector<256x256xf32>
    %27 = arith.addf %25, %26 : vector<256x256xf32>
    %28 = math.tanh %27 : vector<256x256xf32>
    %c768 = arith.constant 768 : index
    %c0_16 = arith.constant 0 : index
    %29 = vector.load %arg2[%c768, %c0_16] : memref<1160x256xf32, #tpu.memory_space<vmem>>, vector<256x128xf32>
    %cst_17 = arith.constant dense<0.000000e+00> : vector<256x128xf32>
    %30 = tpu.matmul %28, %29, %cst_17 {dimension_numbers = #tpu.dot_dimension_numbers<[1], [0], [0], [1], [0, 0, 1, 1], [], []>} : vector<256x256xf32>, vector<256x128xf32>, vector<256x128xf32> -> vector<256x128xf32>
    %31 = vector.broadcast %5 : vector<1x128xf32> to vector<256x128xf32>
    %32 = arith.addf %30, %31 : vector<256x128xf32>
    %cst_18 = arith.constant dense<0xFF800000> : vector<256xf32>
    %33 = vector.multi_reduction <maximumf>, %32, %cst_18 [1] : vector<256x128xf32> to vector<256xf32>
    %34 = vector.shape_cast %33 : vector<256xf32> to vector<256x1xf32>
    %35 = vector.broadcast %34 : vector<256x1xf32> to vector<256x128xf32>
    %36 = arith.subf %32, %35 : vector<256x128xf32>
    %c1024 = arith.constant 1024 : index
    %c0_19 = arith.constant 0 : index
    %37 = vector.load %arg2[%c1024, %c0_19] : memref<1160x256xf32, #tpu.memory_space<vmem>>, vector<128x128xf32>
    %38 = math.exp %36 : vector<256x128xf32>
    %cst_20 = arith.constant dense<0.000000e+00> : vector<256x128xf32>
    %39 = tpu.matmul %38, %37, %cst_20 {dimension_numbers = #tpu.dot_dimension_numbers<[1], [0], [0], [1], [0, 0, 1, 1], [], []>} : vector<256x128xf32>, vector<128x128xf32>, vector<256x128xf32> -> vector<256x128xf32>
    %40 = math.log %39 : vector<256x128xf32>
    %41 = arith.subf %36, %40 : vector<256x128xf32>
    %c0_21 = arith.constant 0 : index
    %c0_22 = arith.constant 0 : index
    %42 = vector.load %arg3[%c0_21, %c0_22] : memref<256x128xf32, #tpu.memory_space<vmem>>, vector<256x128xf32>
    tpu.vector_store %arg3[%c0_21, %c0_22], %41 {strides = array<i32>} : memref<256x128xf32, #tpu.memory_space<vmem>>, vector<256x128xf32>,
    return
  }
  func.func @transform_0(%arg0: i32) -> (i32, i32) {
    %c0_i32 = arith.constant 0 : i32
    %c0_i32_0 = arith.constant 0 : i32
    return %arg0, %c0_i32 : i32, i32
  }
  func.func @transform_1(%arg0: i32) -> (i32, i32) {
    %c0_i32 = arith.constant 0 : i32
    %c0_i32_0 = arith.constant 0 : i32
    %c0_i32_1 = arith.constant 0 : i32
    return %c0_i32, %c0_i32_0 : i32, i32
  }
  func.func @transform_2(%arg0: i32) -> (i32, i32) {
    %c0_i32 = arith.constant 0 : i32
    %c0_i32_0 = arith.constant 0 : i32
    return %arg0, %c0_i32 : i32, i32
  }
}

</mosaic_0001>

<llo_original>
// kernel: tpu_custom_call.1
$region0: #{tpu_custom_call.1}
  #allocation0 [shape = 'u32[]', space=smem, size = 0x4, offset = 0x4, fixed_abs, tag = 'smem constant byte address 0x4 - core index']
  #allocation1 [shape = 'u32[144,128]{1,0:T(1,128)}', space=vmem, size = 0x12000, scoped, tag = 'internal scratch']
  %s0 = inlined_call_operand.hbm [shape: f32[256,128], index: 0, kind: input, shape index: {}]
  %s1 = inlined_call_operand.hbm [shape: f32[1160,256], index: 1, kind: input, shape index: {}]
  %s2 = inlined_call_operand.hbm [shape: f32[256,128], index: 2, kind: output, shape index: {}]
  %s3 = sld [smem:[#allocation0]]
  $region26: #{tpu_custom_call.1} parent=0
    _
  %s5 = ssub.s32 1, %s3
  %s6 = scalar_select 0, %s5, %s3
  $region1: #{tpu_custom_call.1} parent=0
    #allocation2 [shape = 'u8[131072]{0}', space=vmem, size = 0x20000, scoped, tag = 'input window, operand 0, single buffered']
    #allocation3 [shape = 's32[1]{0}', space=sflag, size = 0x4, scoped, tag = 'scoped memory for tpu_custom_call.1']
    #allocation4 [shape = 's32[1]{0}', space=sflag, size = 0x4, scoped, tag = 'scoped memory for tpu_custom_call.1']
    #allocation5 [shape = 'u8[1187840]{0}', space=vmem, size = 0x122000, scoped, tag = 'input window, operand 1, single buffered']
    #allocation6 [shape = 's32[1]{0}', space=sflag, size = 0x4, scoped, tag = 'scoped memory for tpu_custom_call.1']
    #allocation7 [shape = 'u8[131072]{0}', space=vmem, size = 0x20000, scoped, tag = 'output window, operand 0, single buffered']
    %7 = vsyncpa [#allocation3], 0
    %8 = vsyncpa [#allocation6], 0
    %9 = vsyncpa [#allocation4], 0
    // Predicated region
    $region2: #{tpu_custom_call.1} parent=1 // pred_check
      _
    $region3: #{tpu_custom_call.1} parent=1 // pred_check_branch
      %11 = sbr.rel (0) target = $region5
    $region4: #{tpu_custom_call.1} parent=1 // pred_region
      %s13 = ssub.s32 4096, 4096
      %14 = vsyncadd [#allocation3], %s13
      %s15 = sshll.u32 [#allocation2], 4
      %s16 = int_to_ptr.vmem [resolvable:$true] %s15
      %21 = dma.hbm_to_vmem [thread:$0]  %s0, 4096, %s16, [#allocation3], 128, 128, 8
    $region5: #{tpu_custom_call.1} parent=1 // pred_fallthru
      _
    // Predicated region
    $region6: #{tpu_custom_call.1} parent=1 // pred_check
      _
    $region7: #{tpu_custom_call.1} parent=1 // pred_check_branch
      %23 = sbr.rel (0) target = $region9
    $region8: #{tpu_custom_call.1} parent=1 // pred_region
      %s25 = ssub.s32 37120, 37120
      %26 = vsyncadd [#allocation6], %s25
      %s27 = sshll.u32 [#allocation5], 4
      %s28 = int_to_ptr.vmem [resolvable:$true] %s27
      %33 = dma.hbm_to_vmem [thread:$0]  %s1, 37120, %s28, [#allocation6], 256, 256, 16
    $region9: #{tpu_custom_call.1} parent=1 // pred_fallthru
      _
    // Predicated region
    $region10: #{tpu_custom_call.1} parent=1 // pred_check
      _
    $region11: #{tpu_custom_call.1} parent=1 // pred_check_branch
      %35 = sbr.rel (0) target = $region13
    $region12: #{tpu_custom_call.1} parent=1 // pred_region
      %36 = dma.done [#allocation3], 4096
    $region13: #{tpu_custom_call.1} parent=1 // pred_fallthru
      _
    // Predicated region
    $region14: #{tpu_custom_call.1} parent=1 // pred_check
      _
    $region15: #{tpu_custom_call.1} parent=1 // pred_check_branch
      %38 = sbr.rel (0) target = $region17
    $region16: #{tpu_custom_call.1} parent=1 // pred_region
      %39 = dma.done [#allocation6], 37120
    $region17: #{tpu_custom_call.1} parent=1 // pred_fallthru
      _
    %v40 = vld [vmem:[#allocation2] sm:$0xff]
    %v41 = vld [vmem:[#allocation2 + $0x8] sm:$0xff]
    %v42 = vld [vmem:[#allocation2 + $0x10] sm:$0xff]
    %v43 = vld [vmem:[#allocation2 + $0x18] sm:$0xff]
    %v44 = vld [vmem:[#allocation2 + $0x20] sm:$0xff]
    %v45 = vld [vmem:[#allocation2 + $0x28] sm:$0xff]
    %v46 = vld [vmem:[#allocation2 + $0x30] sm:$0xff]
    %v47 = vld [vmem:[#allocation2 + $0x38] sm:$0xff]
    %v48 = vld [vmem:[#allocation2 + $0x40] sm:$0xff]
    %v49 = vld [vmem:[#allocation2 + $0x48] sm:$0xff]
    %v50 = vld [vmem:[#allocation2 + $0x50] sm:$0xff]
    %v51 = vld [vmem:[#allocation2 + $0x58] sm:$0xff]
    %v52 = vld [vmem:[#allocation2 + $0x60] sm:$0xff]
    %v53 = vld [vmem:[#allocation2 + $0x68] sm:$0xff]
    %v54 = vld [vmem:[#allocation2 + $0x70] sm:$0xff]
    %v55 = vld [vmem:[#allocation2 + $0x78] sm:$0xff]
    %v56 = vld [vmem:[#allocation2 + $0x80] sm:$0xff]
    %v57 = vld [vmem:[#allocation2 + $0x88] sm:$0xff]
    %v58 = vld [vmem:[#allocation2 + $0x90] sm:$0xff]
    %v59 = vld [vmem:[#allocation2 + $0x98] sm:$0xff]
    %v60 = vld [vmem:[#allocation2 + $0xa0] sm:$0xff]
    %v61 = vld [vmem:[#allocation2 + $0xa8] sm:$0xff]
    %v62 = vld [vmem:[#allocation2 + $0xb0] sm:$0xff]
    %v63 = vld [vmem:[#allocation2 + $0xb8] sm:$0xff]
    %v64 = vld [vmem:[#allocation2 + $0xc0] sm:$0xff]
    %v65 = vld [vmem:[#allocation2 + $0xc8] sm:$0xff]
    %v66 = vld [vmem:[#allocation2 + $0xd0] sm:$0xff]
    %v67 = vld [vmem:[#allocation2 + $0xd8] sm:$0xff]
    %v68 = vld [vmem:[#allocation2 + $0xe0] sm:$0xff]
    %v69 = vld [vmem:[#allocation2 + $0xe8] sm:$0xff]
    %v70 = vld [vmem:[#allocation2 + $0xf0] sm:$0xff]
    %v71 = vld [vmem:[#allocation2 + $0xf8] sm:$0xff]
    %v72 = vld [vmem:[#allocation5 + $0x900] ss:$0 sm:$0xff]
    %v73 = vld [vmem:[#allocation5 + $0x901] ss:$0 sm:$0xff]
    %s74 = scalar_lea.vmem [#allocation5], 2306
    %v75 = vld [vmem:[%s74] ss:$8 sm:$0x3]
    %s76 = scalar_lea.vmem [#allocation5], 2307
    %v77 = vld [vmem:[%s76] ss:$8 sm:$0x3]
    %v78 = vld [vmem:[#allocation5 + $0x904] ss:$0 sm:$0xff]
    %v79 = vld [vmem:[#allocation5] sm:$0xff]
    %v80 = vld [vmem:[#allocation5 + $0x10] sm:$0xff]
    %v81 = vld [vmem:[#allocation5 + $0x20] sm:$0xff]
    %v82 = vld [vmem:[#allocation5 + $0x30] sm:$0xff]
    %v83 = vld [vmem:[#allocation5 + $0x40] sm:$0xff]
    %v84 = vld [vmem:[#allocation5 + $0x50] sm:$0xff]
    %v85 = vld [vmem:[#allocation5 + $0x60] sm:$0xff]
    %v86 = vld [vmem:[#allocation5 + $0x70] sm:$0xff]
    %v87 = vld [vmem:[#allocation5 + $0x80] sm:$0xff]
    %v88 = vld [vmem:[#allocation5 + $0x90] sm:$0xff]
    %v89 = vld [vmem:[#allocation5 + $0xa0] sm:$0xff]
    %v90 = vld [vmem:[#allocation5 + $0xb0] sm:$0xff]
    %v91 = vld [vmem:[#allocation5 + $0xc0] sm:$0xff]
    %v92 = vld [vmem:[#allocation5 + $0xd0] sm:$0xff]
    %v93 = vld [vmem:[#allocation5 + $0xe0] sm:$0xff]
    %v94 = vld [vmem:[#allocation5 + $0xf0] sm:$0xff]
    %95 = vmatprep.subr.mxu0 0.0
    %96 = vmatpush1.msra.mxu0 %v79
    %97 = vmatprep.subr.mxu0 0.0
    %98 = vmatpush1.msra.mxu0 %v80
    %99 = vmatprep.subr.mxu0 0.0
    %100 = vmatpush1.msra.mxu0 %v81
    %101 = vmatprep.subr.mxu0 0.0
    %102 = vmatpush1.msra.mxu0 %v82
    %103 = vmatprep.subr.mxu0 0.0
    %104 = vmatpush1.msra.mxu0 %v83
    %105 = vmatprep.subr.mxu0 0.0
    %106 = vmatpush1.msra.mxu0 %v84
    %107 = vmatprep.subr.mxu0 0.0
    %108 = vmatpush1.msra.mxu0 %v85
    %109 = vmatprep.subr.mxu0 0.0
    %110 = vmatpush1.msra.mxu0 %v86
    %111 = vmatprep.subr.mxu0 0.0
    %112 = vmatpush1.msra.mxu0 %v87
    %113 = vmatprep.subr.mxu0 0.0
    %114 = vmatpush1.msra.mxu0 %v88
    %115 = vmatprep.subr.mxu0 0.0
    %116 = vmatpush1.msra.mxu0 %v89
    %117 = vmatprep.subr.mxu0 0.0
    %118 = vmatpush1.msra.mxu0 %v90
    %119 = vmatprep.subr.mxu0 0.0
    %120 = vmatpush1.msra.mxu0 %v91
    %121 = vmatprep.subr.mxu0 0.0
    %122 = vmatpush1.msra.mxu0 %v92
    %123 = vmatprep.subr.mxu0 0.0
    %124 = vmatpush1.msra.mxu0 %v93
    %125 = vmatprep.subr.mxu0 0.0
    %126 = vmatpush1.msra.mxu0 %v94
    %127 = vmatprep.subr.mxu0 0.0
    %128 = vmatpush1.msra.mxu0 0.0
    %129 = vmatprep.subr.mxu0 0.0
    %130 = vmatpush1.msra.mxu0 0.0
    %131 = vmatprep.subr.mxu0 0.0
    %132 = vmatpush1.msra.mxu0 0.0
    %133 = vmatprep.subr.mxu0 0.0
    %134 = vmatpush1.msra.mxu0 0.0
    %135 = vmatprep.subr.mxu0 0.0
    %136 = vmatpush1.msra.mxu0 0.0
    %137 = vmatprep.subr.mxu0 0.0
    %138 = vmatpush1.msra.mxu0 0.0
    %139 = vmatprep.subr.mxu0 0.0
    %140 = vmatpush1.msra.mxu0 0.0
    %141 = vmatprep.subr.mxu0 0.0
    %142 = vmatpush1.msra.mxu0 0.0
    %143 = vmatprep.subr.mxu0 0.0
    %144 = vmatpush1.msra.mxu0 0.0
    %145 = vmatprep.subr.mxu0 0.0
    %146 = vmatpush1.msra.mxu0 0.0
    %147 = vmatprep.subr.mxu0 0.0
    %148 = vmatpush1.msra.mxu0 0.0
    %149 = vmatprep.subr.mxu0 0.0
    %150 = vmatpush1.msra.mxu0 0.0
    %151 = vmatprep.subr.mxu0 0.0
    %152 = vmatpush1.msra.mxu0 0.0
    %153 = vmatprep.subr.mxu0 0.0
    %154 = vmatpush1.msra.mxu0 0.0
    %155 = vmatprep.subr.mxu0 0.0
    %156 = vmatpush1.msra.mxu0 0.0
    %157 = vmatprep.subr.mxu0 0.0
    %158 = vmatpush1.msra.mxu0 0.0
    %159 = vmatprep.mubr.f32.mxu0 0.0
    %160 = vmatmul.mubr.f32.gmra.mrb[0].mxu0 %v40
    %v161 = vpop.f32.mrb[0].mxu0
    %v162 = vadd.f32 %v72, %v161
    %v163 = vpop.f32.mrb[0].mxu0
    %164 = vmatprep.mubr.f32.mxu0 0.0
    %165 = vmatmul.mubr.f32.gmra.mrb[0].mxu0 %v41
    %v166 = vpop.f32.mrb[0].mxu0
    %v167 = vadd.f32 %v72, %v166
    %v168 = vpop.f32.mrb[0].mxu0
    %169 = vmatprep.mubr.f32.mxu0 0.0
    %170 = vmatmul.mubr.f32.gmra.mrb[0].mxu0 %v42
    %v171 = vpop.f32.mrb[0].mxu0
    %v172 = vadd.f32 %v72, %v171
    %v173 = vpop.f32.mrb[0].mxu0
    %174 = vmatprep.mubr.f32.mxu0 0.0
    %175 = vmatmul.mubr.f32.gmra.mrb[0].mxu0 %v43
    %v176 = vpop.f32.mrb[0].mxu0
    %v177 = vadd.f32 %v72, %v176
    %v178 = vpop.f32.mrb[0].mxu0
    %179 = vmatprep.mubr.f32.mxu0 0.0
    %180 = vmatmul.mubr.f32.gmra.mrb[0].mxu0 %v44
    %v181 = vpop.f32.mrb[0].mxu0
    %v182 = vadd.f32 %v72, %v181
    %v183 = vpop.f32.mrb[0].mxu0
    %184 = vmatprep.mubr.f32.mxu0 0.0
    %185 = vmatmul.mubr.f32.gmra.mrb[0].mxu0 %v45
    %v186 = vpop.f32.mrb[0].mxu0
    %v187 = vadd.f32 %v72, %v186
    %v188 = vpop.f32.mrb[0].mxu0
    %189 = vmatprep.mubr.f32.mxu0 0.0
    %190 = vmatmul.mubr.f32.gmra.mrb[0].mxu0 %v46
    %v191 = vpop.f32.mrb[0].mxu0
    %v192 = vadd.f32 %v72, %v191
    %v193 = vpop.f32.mrb[0].mxu0
    %194 = vmatprep.mubr.f32.mxu0 0.0
    %195 = vmatmul.mubr.f32.gmra.mrb[0].mxu0 %v47
    %v196 = vpop.f32.mrb[0].mxu0
    %v197 = vadd.f32 %v72, %v196
    %v198 = vpop.f32.mrb[0].mxu0
    %199 = vmatprep.mubr.f32.mxu0 0.0
    %200 = vmatmul.mubr.f32.gmra.mrb[0].mxu0 %v48
    %v201 = vpop.f32.mrb[0].mxu0
    %v202 = vadd.f32 %v72, %v201
    %v203 = vpop.f32.mrb[0].mxu0
    %204 = vmatprep.mubr.f32.mxu0 0.0
    %205 = vmatmul.mubr.f32.gmra.mrb[0].mxu0 %v49
    %v206 = vpop.f32.mrb[0].mxu0
    %v207 = vadd.f32 %v72, %v206
    %v208 = vpop.f32.mrb[0].mxu0
    %209 = vmatprep.mubr.f32.mxu0 0.0
    %210 = vmatmul.mubr.f32.gmra.mrb[0].mxu0 %v50
    %v211 = vpop.f32.mrb[0].mxu0
    %v212 = vadd.f32 %v72, %v211
    %v213 = vpop.f32.mrb[0].mxu0
    %214 = vmatprep.mubr.f32.mxu0 0.0
    %215 = vmatmul.mubr.f32.gmra.mrb[0].mxu0 %v51
    %v216 = vpop.f32.mrb[0].mxu0
    %v217 = vadd.f32 %v72, %v216
    %v218 = vpop.f32.mrb[0].mxu0
    %219 = vmatprep.mubr.f32.mxu0 0.0
    %220 = vmatmul.mubr.f32.gmra.mrb[0].mxu0 %v52
    %v221 = vpop.f32.mrb[0].mxu0
    %v222 = vadd.f32 %v72, %v221
    %v223 = vpop.f32.mrb[0].mxu0
    %224 = vmatprep.mubr.f32.mxu0 0.0
    %225 = vmatmul.mubr.f32.gmra.mrb[0].mxu0 %v53
    %v226 = vpop.f32.mrb[0].mxu0
    %v227 = vadd.f32 %v72, %v226
    %v228 = vpop.f32.mrb[0].mxu0
    %229 = vmatprep.mubr.f32.mxu0 0.0
    %230 = vmatmul.mubr.f32.gmra.mrb[0].mxu0 %v54
    %v231 = vpop.f32.mrb[0].mxu0
    %v232 = vadd.f32 %v72, %v231
    %v233 = vpop.f32.mrb[0].mxu0
    %234 = vmatprep.mubr.f32.mxu0 0.0
    %235 = vmatmul.mubr.f32.gmra.mrb[0].mxu0 %v55
    %v236 = vpop.f32.mrb[0].mxu0
    %v237 = vadd.f32 %v72, %v236
    %v238 = vpop.f32.mrb[0].mxu0
    %239 = vmatprep.mubr.f32.mxu0 0.0
    %240 = vmatmul.mubr.f32.gmra.mrb[0].mxu0 %v56
    %v241 = vpop.f32.mrb[0].mxu0
    %v242 = vadd.f32 %v72, %v241
    %v243 = vpop.f32.mrb[0].mxu0
    %244 = vmatprep.mubr.f32.mxu0 0.0
    %245 = vmatmul.mubr.f32.gmra.mrb[0].mxu0 %v57
    %v246 = vpop.f32.mrb[0].mxu0
    %v247 = vadd.f32 %v72, %v246
    %v248 = vpop.f32.mrb[0].mxu0
    %249 = vmatprep.mubr.f32.mxu0 0.0
    %250 = vmatmul.mubr.f32.gmra.mrb[0].mxu0 %v58
    %v251 = vpop.f32.mrb[0].mxu0
    %v252 = vadd.f32 %v72, %v251
    %v253 = vpop.f32.mrb[0].mxu0
    %254 = vmatprep.mubr.f32.mxu0 0.0
    %255 = vmatmul.mubr.f32.gmra.mrb[0].mxu0 %v59
    %v256 = vpop.f32.mrb[0].mxu0
    %v257 = vadd.f32 %v72, %v256
    %v258 = vpop.f32.mrb[0].mxu0
    %259 = vmatprep.mubr.f32.mxu0 0.0
    %260 = vmatmul.mubr.f32.gmra.mrb[0].mxu0 %v60
    %v261 = vpop.f32.mrb[0].mxu0
    %v262 = vadd.f32 %v72, %v261
    %v263 = vpop.f32.mrb[0].mxu0
    %264 = vmatprep.mubr.f32.mxu0 0.0
    %265 = vmatmul.mubr.f32.gmra.mrb[0].mxu0 %v61
    %v266 = vpop.f32.mrb[0].mxu0
    %v267 = vadd.f32 %v72, %v266
    %v268 = vpop.f32.mrb[0].mxu0
    %269 = vmatprep.mubr.f32.mxu0 0.0
    %270 = vmatmul.mubr.f32.gmra.mrb[0].mxu0 %v62
    %v271 = vpop.f32.mrb[0].mxu0
    %v272 = vadd.f32 %v72, %v271
    %v273 = vpop.f32.mrb[0].mxu0
    %274 = vmatprep.mubr.f32.mxu0 0.0
    %275 = vmatmul.mubr.f32.gmra.mrb[0].mxu0 %v63
    %v276 = vpop.f32.mrb[0].mxu0
    %v277 = vadd.f32 %v72, %v276
    %v278 = vpop.f32.mrb[0].mxu0
    %279 = vmatprep.mubr.f32.mxu0 0.0
    %280 = vmatmul.mubr.f32.gmra.mrb[0].mxu0 %v64
    %v281 = vpop.f32.mrb[0].mxu0
    %v282 = vadd.f32 %v72, %v281
    %v283 = vpop.f32.mrb[0].mxu0
    %284 = vmatprep.mubr.f32.mxu0 0.0
    %285 = vmatmul.mubr.f32.gmra.mrb[0].mxu0 %v65
    %v286 = vpop.f32.mrb[0].mxu0
    %v287 = vadd.f32 %v72, %v286
    %v288 = vpop.f32.mrb[0].mxu0
    %289 = vmatprep.mubr.f32.mxu0 0.0
    %290 = vmatmul.mubr.f32.gmra.mrb[0].mxu0 %v66
    %v291 = vpop.f32.mrb[0].mxu0
    %v292 = vadd.f32 %v72, %v291
    %v293 = vpop.f32.mrb[0].mxu0
    %294 = vmatprep.mubr.f32.mxu0 0.0
    %295 = vmatmul.mubr.f32.gmra.mrb[0].mxu0 %v67
    %v296 = vpop.f32.mrb[0].mxu0
    %v297 = vadd.f32 %v72, %v296
    %v298 = vpop.f32.mrb[0].mxu0
    %299 = vmatprep.mubr.f32.mxu0 0.0
    %300 = vmatmul.mubr.f32.gmra.mrb[0].mxu0 %v68
    %v301 = vpop.f32.mrb[0].mxu0
    %v302 = vadd.f32 %v72, %v301
    %v303 = vpop.f32.mrb[0].mxu0
    %304 = vmatprep.mubr.f32.mxu0 0.0
    %305 = vmatmul.mubr.f32.gmra.mrb[0].mxu0 %v69
    %v306 = vpop.f32.mrb[0].mxu0
    %v307 = vadd.f32 %v72, %v306
    %v308 = vpop.f32.mrb[0].mxu0
    %309 = vmatprep.mubr.f32.mxu0 0.0
    %310 = vmatmul.mubr.f32.gmra.mrb[0].mxu0 %v70
    %v311 = vpop.f32.mrb[0].mxu0
    %v312 = vadd.f32 %v72, %v311
    %v313 = vpop.f32.mrb[0].mxu0
    %314 = vmatprep.mubr.f32.mxu0 0.0
    %315 = vmatmul.mubr.f32.gmra.mrb[0].mxu0 %v71
    %v316 = vpop.f32.mrb[0].mxu0
    %v317 = vadd.f32 %v72, %v316
    %v318 = vpop.f32.mrb[0].mxu0
    %319 = vdwg.mxu0
    %v320 = vtanh.pop %v162
    %v321 = vtanh.pop %v167
    %v322 = vtanh.pop %v172
    %v323 = vtanh.pop %v177
    %v324 = vtanh.pop %v182
    %v325 = vtanh.pop %v187
    %v326 = vtanh.pop %v192
    %v327 = vtanh.pop %v197
    %v328 = vtanh.pop %v202
    %v329 = vtanh.pop %v207
    %v330 = vtanh.pop %v212
    %v331 = vtanh.pop %v217
    %v332 = vtanh.pop %v222
    %v333 = vtanh.pop %v227
    %v334 = vtanh.pop %v232
    %v335 = vtanh.pop %v237
    %v336 = vtanh.pop %v242
    %v337 = vtanh.pop %v247
    %v338 = vtanh.pop %v252
    %v339 = vtanh.pop %v257
    %v340 = vtanh.pop %v262
    %v341 = vtanh.pop %v267
    %v342 = vtanh.pop %v272
    %v343 = vtanh.pop %v277
    %v344 = vtanh.pop %v282
    %v345 = vtanh.pop %v287
    %v346 = vtanh.pop %v292
    %v347 = vtanh.pop %v297
    %v348 = vtanh.pop %v302
    %v349 = vtanh.pop %v307
    %v350 = vtanh.pop %v312
    %v351 = vtanh.pop %v317
    %v352 = vld [vmem:[#allocation5 + $0x100] sm:$0xff]
    %v353 = vld [vmem:[#allocation5 + $0x110] sm:$0xff]
    %v354 = vld [vmem:[#allocation5 + $0x120] sm:$0xff]
    %v355 = vld [vmem:[#allocation5 + $0x130] sm:$0xff]
    %v356 = vld [vmem:[#allocation5 + $0x140] sm:$0xff]
    %v357 = vld [vmem:[#allocation5 + $0x150] sm:$0xff]
    %v358 = vld [vmem:[#allocation5 + $0x160] sm:$0xff]
    %v359 = vld [vmem:[#allocation5 + $0x170] sm:$0xff]
    %v360 = vld [vmem:[#allocation5 + $0x180] sm:$0xff]
    %v361 = vld [vmem:[#allocation5 + $0x190] sm:$0xff]
    %v362 = vld [vmem:[#allocation5 + $0x1a0] sm:$0xff]
    %v363 = vld [vmem:[#allocation5 + $0x1b0] sm:$0xff]
    %v364 = vld [vmem:[#allocation5 + $0x1c0] sm:$0xff]
    %v365 = vld [vmem:[#allocation5 + $0x1d0] sm:$0xff]
    %v366 = vld [vmem:[#allocation5 + $0x1e0] sm:$0xff]
    %v367 = vld [vmem:[#allocation5 + $0x1f0] sm:$0xff]
    %368 = vmatprep.subr.mxu0 0.0
    %369 = vmatpush1.msra.mxu0 %v352
    %370 = vmatprep.subr.mxu0 0.0
    %371 = vmatpush1.msra.mxu0 %v353
    %372 = vmatprep.subr.mxu0 0.0
    %373 = vmatpush1.msra.mxu0 %v354
    %374 = vmatprep.subr.mxu0 0.0
    %375 = vmatpush1.msra.mxu0 %v355
    %376 = vmatprep.subr.mxu0 0.0
    %377 = vmatpush1.msra.mxu0 %v356
    %378 = vmatprep.subr.mxu0 0.0
    %379 = vmatpush1.msra.mxu0 %v357
    %380 = vmatprep.subr.mxu0 0.0
    %381 = vmatpush1.msra.mxu0 %v358
    %382 = vmatprep.subr.mxu0 0.0
    %383 = vmatpush1.msra.mxu0 %v359
    %384 = vmatprep.subr.mxu0 0.0
    %385 = vmatpush1.msra.mxu0 %v360
    %386 = vmatprep.subr.mxu0 0.0
    %387 = vmatpush1.msra.mxu0 %v361
    %388 = vmatprep.subr.mxu0 0.0
    %389 = vmatpush1.msra.mxu0 %v362
    %390 = vmatprep.subr.mxu0 0.0
    %391 = vmatpush1.msra.mxu0 %v363
    %392 = vmatprep.subr.mxu0 0.0
    %393 = vmatpush1.msra.mxu0 %v364
    %394 = vmatprep.subr.mxu0 0.0
    %395 = vmatpush1.msra.mxu0 %v365
    %396 = vmatprep.subr.mxu0 0.0
    %397 = vmatpush1.msra.mxu0 %v366
    %398 = vmatprep.subr.mxu0 0.0
    %399 = vmatpush1.msra.mxu0 %v367
    %400 = vmatprep.subr.mxu0 0.0
    %401 = vmatpush1.msra.mxu0 0.0
    %402 = vmatprep.subr.mxu0 0.0
    %403 = vmatpush1.msra.mxu0 0.0
    %404 = vmatprep.subr.mxu0 0.0
    %405 = vmatpush1.msra.mxu0 0.0
    %406 = vmatprep.subr.mxu0 0.0
    %407 = vmatpush1.msra.mxu0 0.0
    %408 = vmatprep.subr.mxu0 0.0
    %409 = vmatpush1.msra.mxu0 0.0
    %410 = vmatprep.subr.mxu0 0.0
    %411 = vmatpush1.msra.mxu0 0.0
    %412 = vmatprep.subr.mxu0 0.0
    %413 = vmatpush1.msra.mxu0 0.0
    %414 = vmatprep.subr.mxu0 0.0
    %415 = vmatpush1.msra.mxu0 0.0
    %416 = vmatprep.subr.mxu0 0.0
    %417 = vmatpush1.msra.mxu0 0.0
    %418 = vmatprep.subr.mxu0 0.0
    %419 = vmatpush1.msra.mxu0 0.0
    %420 = vmatprep.subr.mxu0 0.0
    %421 = vmatpush1.msra.mxu0 0.0
    %422 = vmatprep.subr.mxu0 0.0
    %423 = vmatpush1.msra.mxu0 0.0
    %424 = vmatprep.subr.mxu0 0.0
    %425 = vmatpush1.msra.mxu0 0.0
    %426 = vmatprep.subr.mxu0 0.0
    %427 = vmatpush1.msra.mxu0 0.0
    %428 = vmatprep.subr.mxu0 0.0
    %429 = vmatpush1.msra.mxu0 0.0
    %430 = vmatprep.subr.mxu0 0.0
    %431 = vmatpush1.msra.mxu0 0.0
    %432 = vmatprep.mubr.f32.mxu0 0.0
    %433 = vmatmul.mubr.f32.gmra.mrb[0].mxu0 %v320
    %v434 = vpop.f32.mrb[0].mxu0
    %v435 = vadd.f32 %v73, %v434
    %v436 = vpop.f32.mrb[0].mxu0
    %437 = vmatprep.mubr.f32.mxu0 0.0
    %438 = vmatmul.mubr.f32.gmra.mrb[0].mxu0 %v321
    %v439 = vpop.f32.mrb[0].mxu0
    %v440 = vadd.f32 %v73, %v439
    %v441 = vpop.f32.mrb[0].mxu0
    %442 = vmatprep.mubr.f32.mxu0 0.0
    %443 = vmatmul.mubr.f32.gmra.mrb[0].mxu0 %v322
    %v444 = vpop.f32.mrb[0].mxu0
    %v445 = vadd.f32 %v73, %v444
    %v446 = vpop.f32.mrb[0].mxu0
    %447 = vmatprep.mubr.f32.mxu0 0.0
    %448 = vmatmul.mubr.f32.gmra.mrb[0].mxu0 %v323
    %v449 = vpop.f32.mrb[0].mxu0
    %v450 = vadd.f32 %v73, %v449
    %v451 = vpop.f32.mrb[0].mxu0
    %452 = vmatprep.mubr.f32.mxu0 0.0
    %453 = vmatmul.mubr.f32.gmra.mrb[0].mxu0 %v324
    %v454 = vpop.f32.mrb[0].mxu0
    %v455 = vadd.f32 %v73, %v454
    %v456 = vpop.f32.mrb[0].mxu0
    %457 = vmatprep.mubr.f32.mxu0 0.0
    %458 = vmatmul.mubr.f32.gmra.mrb[0].mxu0 %v325
    %v459 = vpop.f32.mrb[0].mxu0
    %v460 = vadd.f32 %v73, %v459
    %v461 = vpop.f32.mrb[0].mxu0
    %462 = vmatprep.mubr.f32.mxu0 0.0
    %463 = vmatmul.mubr.f32.gmra.mrb[0].mxu0 %v326
    %v464 = vpop.f32.mrb[0].mxu0
    %v465 = vadd.f32 %v73, %v464
    %v466 = vpop.f32.mrb[0].mxu0
    %467 = vmatprep.mubr.f32.mxu0 0.0
    %468 = vmatmul.mubr.f32.gmra.mrb[0].mxu0 %v327
    %v469 = vpop.f32.mrb[0].mxu0
    %v470 = vadd.f32 %v73, %v469
    %v471 = vpop.f32.mrb[0].mxu0
    %472 = vmatprep.mubr.f32.mxu0 0.0
    %473 = vmatmul.mubr.f32.gmra.mrb[0].mxu0 %v328
    %v474 = vpop.f32.mrb[0].mxu0
    %v475 = vadd.f32 %v73, %v474
    %v476 = vpop.f32.mrb[0].mxu0
    %477 = vmatprep.mubr.f32.mxu0 0.0
    %478 = vmatmul.mubr.f32.gmra.mrb[0].mxu0 %v329
    %v479 = vpop.f32.mrb[0].mxu0
    %v480 = vadd.f32 %v73, %v479
    %v481 = vpop.f32.mrb[0].mxu0
    %482 = vmatprep.mubr.f32.mxu0 0.0
    %483 = vmatmul.mubr.f32.gmra.mrb[0].mxu0 %v330
    %v484 = vpop.f32.mrb[0].mxu0
    %v485 = vadd.f32 %v73, %v484
    %v486 = vpop.f32.mrb[0].mxu0
    %487 = vmatprep.mubr.f32.mxu0 0.0
    %488 = vmatmul.mubr.f32.gmra.mrb[0].mxu0 %v331
    %v489 = vpop.f32.mrb[0].mxu0
    %v490 = vadd.f32 %v73, %v489
    %v491 = vpop.f32.mrb[0].mxu0
    %492 = vmatprep.mubr.f32.mxu0 0.0
    %493 = vmatmul.mubr.f32.gmra.mrb[0].mxu0 %v332
    %v494 = vpop.f32.mrb[0].mxu0
    %v495 = vadd.f32 %v73, %v494
    %v496 = vpop.f32.mrb[0].mxu0
    %497 = vmatprep.mubr.f32.mxu0 0.0
    %498 = vmatmul.mubr.f32.gmra.mrb[0].mxu0 %v333
    %v499 = vpop.f32.mrb[0].mxu0
    %v500 = vadd.f32 %v73, %v499
    %v501 = vpop.f32.mrb[0].mxu0
    %502 = vmatprep.mubr.f32.mxu0 0.0
    %503 = vmatmul.mubr.f32.gmra.mrb[0].mxu0 %v334
    %v504 = vpop.f32.mrb[0].mxu0
    %v505 = vadd.f32 %v73, %v504
    %v506 = vpop.f32.mrb[0].mxu0
    %507 = vmatprep.mubr.f32.mxu0 0.0
    %508 = vmatmul.mubr.f32.gmra.mrb[0].mxu0 %v335
    %v509 = vpop.f32.mrb[0].mxu0
    %v510 = vadd.f32 %v73, %v509
    %v511 = vpop.f32.mrb[0].mxu0
    %512 = vmatprep.mubr.f32.mxu0 0.0
    %513 = vmatmul.mubr.f32.gmra.mrb[0].mxu0 %v336
    %v514 = vpop.f32.mrb[0].mxu0
    %v515 = vadd.f32 %v73, %v514
    %v516 = vpop.f32.mrb[0].mxu0
    %517 = vmatprep.mubr.f32.mxu0 0.0
    %518 = vmatmul.mubr.f32.gmra.mrb[0].mxu0 %v337
    %v519 = vpop.f32.mrb[0].mxu0
    %v520 = vadd.f32 %v73, %v519
    %v521 = vpop.f32.mrb[0].mxu0
    %522 = vmatprep.mubr.f32.mxu0 0.0
    %523 = vmatmul.mubr.f32.gmra.mrb[0].mxu0 %v338
    %v524 = vpop.f32.mrb[0].mxu0
    %v525 = vadd.f32 %v73, %v524
    %v526 = vpop.f32.mrb[0].mxu0
    %527 = vmatprep.mubr.f32.mxu0 0.0
    %528 = vmatmul.mubr.f32.gmra.mrb[0].mxu0 %v339
    %v529 = vpop.f32.mrb[0].mxu0
    %v530 = vadd.f32 %v73, %v529
    %v531 = vpop.f32.mrb[0].mxu0
    %532 = vmatprep.mubr.f32.mxu0 0.0
    %533 = vmatmul.mubr.f32.gmra.mrb[0].mxu0 %v340
    %v534 = vpop.f32.mrb[0].mxu0
    %v535 = vadd.f32 %v73, %v534
    %v536 = vpop.f32.mrb[0].mxu0
    %537 = vmatprep.mubr.f32.mxu0 0.0
    %538 = vmatmul.mubr.f32.gmra.mrb[0].mxu0 %v341
    %v539 = vpop.f32.mrb[0].mxu0
    %v540 = vadd.f32 %v73, %v539
    %v541 = vpop.f32.mrb[0].mxu0
    %542 = vmatprep.mubr.f32.mxu0 0.0
    %543 = vmatmul.mubr.f32.gmra.mrb[0].mxu0 %v342
    %v544 = vpop.f32.mrb[0].mxu0
    %v545 = vadd.f32 %v73, %v544
    %v546 = vpop.f32.mrb[0].mxu0
    %547 = vmatprep.mubr.f32.mxu0 0.0
    %548 = vmatmul.mubr.f32.gmra.mrb[0].mxu0 %v343
    %v549 = vpop.f32.mrb[0].mxu0
    %v550 = vadd.f32 %v73, %v549
    %v551 = vpop.f32.mrb[0].mxu0
    %552 = vmatprep.mubr.f32.mxu0 0.0
    %553 = vmatmul.mubr.f32.gmra.mrb[0].mxu0 %v344
    %v554 = vpop.f32.mrb[0].mxu0
    %v555 = vadd.f32 %v73, %v554
    %v556 = vpop.f32.mrb[0].mxu0
    %557 = vmatprep.mubr.f32.mxu0 0.0
    %558 = vmatmul.mubr.f32.gmra.mrb[0].mxu0 %v345
    %v559 = vpop.f32.mrb[0].mxu0
    %v560 = vadd.f32 %v73, %v559
    %v561 = vpop.f32.mrb[0].mxu0
    %562 = vmatprep.mubr.f32.mxu0 0.0
    %563 = vmatmul.mubr.f32.gmra.mrb[0].mxu0 %v346
    %v564 = vpop.f32.mrb[0].mxu0
    %v565 = vadd.f32 %v73, %v564
    %v566 = vpop.f32.mrb[0].mxu0
    %567 = vmatprep.mubr.f32.mxu0 0.0
    %568 = vmatmul.mubr.f32.gmra.mrb[0].mxu0 %v347
    %v569 = vpop.f32.mrb[0].mxu0
    %v570 = vadd.f32 %v73, %v569
    %v571 = vpop.f32.mrb[0].mxu0
    %572 = vmatprep.mubr.f32.mxu0 0.0
    %573 = vmatmul.mubr.f32.gmra.mrb[0].mxu0 %v348
    %v574 = vpop.f32.mrb[0].mxu0
    %v575 = vadd.f32 %v73, %v574
    %v576 = vpop.f32.mrb[0].mxu0
    %577 = vmatprep.mubr.f32.mxu0 0.0
    %578 = vmatmul.mubr.f32.gmra.mrb[0].mxu0 %v349
    %v579 = vpop.f32.mrb[0].mxu0
    %v580 = vadd.f32 %v73, %v579
    %v581 = vpop.f32.mrb[0].mxu0
    %582 = vmatprep.mubr.f32.mxu0 0.0
    %583 = vmatmul.mubr.f32.gmra.mrb[0].mxu0 %v350
    %v584 = vpop.f32.mrb[0].mxu0
    %v585 = vadd.f32 %v73, %v584
    %v586 = vpop.f32.mrb[0].mxu0
    %587 = vmatprep.mubr.f32.mxu0 0.0
    %588 = vmatmul.mubr.f32.gmra.mrb[0].mxu0 %v351
    %v589 = vpop.f32.mrb[0].mxu0
    %v590 = vadd.f32 %v73, %v589
    %v591 = vpop.f32.mrb[0].mxu0
    %592 = vdwg.mxu0
    %v593 = vtanh.pop %v435
    %v594 = vtanh.pop %v440
    %v595 = vtanh.pop %v445
    %v596 = vtanh.pop %v450
    %v597 = vtanh.pop %v455
    %v598 = vtanh.pop %v460
    %v599 = vtanh.pop %v465
    %v600 = vtanh.pop %v470
    %v601 = vtanh.pop %v475
    %v602 = vtanh.pop %v480
    %v603 = vtanh.pop %v485
    %v604 = vtanh.pop %v490
    %v605 = vtanh.pop %v495
    %v606 = vtanh.pop %v500
    %v607 = vtanh.pop %v505
    %v608 = vtanh.pop %v510
    %v609 = vtanh.pop %v515
    %v610 = vtanh.pop %v520
    %v611 = vtanh.pop %v525
    %v612 = vtanh.pop %v530
    %v613 = vtanh.pop %v535
    %v614 = vtanh.pop %v540
    %v615 = vtanh.pop %v545
    %v616 = vtanh.pop %v550
    %v617 = vtanh.pop %v555
    %v618 = vtanh.pop %v560
    %v619 = vtanh.pop %v565
    %v620 = vtanh.pop %v570
    %v621 = vtanh.pop %v575
    %v622 = vtanh.pop %v580
    %v623 = vtanh.pop %v585
    %v624 = vtanh.pop %v590
    %v625 = vld [vmem:[#allocation5 + $0x500] sm:$0xff]
    %v626 = vld [vmem:[#allocation5 + $0x508] sm:$0xff]
    %v627 = vld [vmem:[#allocation5 + $0x510] sm:$0xff]
    %v628 = vld [vmem:[#allocation5 + $0x518] sm:$0xff]
    %v629 = vld [vmem:[#allocation5 + $0x520] sm:$0xff]
    %v630 = vld [vmem:[#allocation5 + $0x528] sm:$0xff]
    %v631 = vld [vmem:[#allocation5 + $0x530] sm:$0xff]
    %v632 = vld [vmem:[#allocation5 + $0x538] sm:$0xff]
    %v633 = vld [vmem:[#allocation5 + $0x540] sm:$0xff]
    %v634 = vld [vmem:[#allocation5 + $0x548] sm:$0xff]
    %v635 = vld [vmem:[#allocation5 + $0x550] sm:$0xff]
    %v636 = vld [vmem:[#allocation5 + $0x558] sm:$0xff]
    %v637 = vld [vmem:[#allocation5 + $0x560] sm:$0xff]
    %v638 = vld [vmem:[#allocation5 + $0x568] sm:$0xff]
    %v639 = vld [vmem:[#allocation5 + $0x570] sm:$0xff]
    %v640 = vld [vmem:[#allocation5 + $0x578] sm:$0xff]
    %v641 = vld [vmem:[#allocation5 + $0x580] sm:$0xff]
    %v642 = vld [vmem:[#allocation5 + $0x588] sm:$0xff]
    %v643 = vld [vmem:[#allocation5 + $0x590] sm:$0xff]
    %v644 = vld [vmem:[#allocation5 + $0x598] sm:$0xff]
    %v645 = vld [vmem:[#allocation5 + $0x5a0] sm:$0xff]
    %v646 = vld [vmem:[#allocation5 + $0x5a8] sm:$0xff]
    %v647 = vld [vmem:[#allocation5 + $0x5b0] sm:$0xff]
    %v648 = vld [vmem:[#allocation5 + $0x5b8] sm:$0xff]
    %v649 = vld [vmem:[#allocation5 + $0x5c0] sm:$0xff]
    %v650 = vld [vmem:[#allocation5 + $0x5c8] sm:$0xff]
    %v651 = vld [vmem:[#allocation5 + $0x5d0] sm:$0xff]
    %v652 = vld [vmem:[#allocation5 + $0x5d8] sm:$0xff]
    %v653 = vld [vmem:[#allocation5 + $0x5e0] sm:$0xff]
    %v654 = vld [vmem:[#allocation5 + $0x5e8] sm:$0xff]
    %v655 = vld [vmem:[#allocation5 + $0x5f0] sm:$0xff]
    %v656 = vld [vmem:[#allocation5 + $0x5f8] sm:$0xff]
    %657 = vmatprep.subr.mxu0 %v626
    %658 = vmatpush1.msra.mxu0 %v625
    %659 = vmatprep.subr.mxu0 %v628
    %660 = vmatpush1.msra.mxu0 %v627
    %661 = vmatprep.subr.mxu0 %v630
    %662 = vmatpush1.msra.mxu0 %v629
    %663 = vmatprep.subr.mxu0 %v632
    %664 = vmatpush1.msra.mxu0 %v631
    %665 = vmatprep.subr.mxu0 %v634
    %666 = vmatpush1.msra.mxu0 %v633
    %667 = vmatprep.subr.mxu0 %v636
    %668 = vmatpush1.msra.mxu0 %v635
    %669 = vmatprep.subr.mxu0 %v638
    %670 = vmatpush1.msra.mxu0 %v637
    %671 = vmatprep.subr.mxu0 %v640
    %672 = vmatpush1.msra.mxu0 %v639
    %673 = vmatprep.subr.mxu0 %v642
    %674 = vmatpush1.msra.mxu0 %v641
    %675 = vmatprep.subr.mxu0 %v644
    %676 = vmatpush1.msra.mxu0 %v643
    %677 = vmatprep.subr.mxu0 %v646
    %678 = vmatpush1.msra.mxu0 %v645
    %679 = vmatprep.subr.mxu0 %v648
    %680 = vmatpush1.msra.mxu0 %v647
    %681 = vmatprep.subr.mxu0 %v650
    %682 = vmatpush1.msra.mxu0 %v649
    %683 = vmatprep.subr.mxu0 %v652
    %684 = vmatpush1.msra.mxu0 %v651
    %685 = vmatprep.subr.mxu0 %v654
    %686 = vmatpush1.msra.mxu0 %v653
    %687 = vmatprep.subr.mxu0 %v656
    %688 = vmatpush1.msra.mxu0 %v655
    %689 = vmatprep.subr.mxu0 0.0
    %690 = vmatpush1.msra.mxu0 0.0
    %691 = vmatprep.subr.mxu0 0.0
    %692 = vmatpush1.msra.mxu0 0.0
    %693 = vmatprep.subr.mxu0 0.0
    %694 = vmatpush1.msra.mxu0 0.0
    %695 = vmatprep.subr.mxu0 0.0
    %696 = vmatpush1.msra.mxu0 0.0
    %697 = vmatprep.subr.mxu0 0.0
    %698 = vmatpush1.msra.mxu0 0.0
    %699 = vmatprep.subr.mxu0 0.0
    %700 = vmatpush1.msra.mxu0 0.0
    %701 = vmatprep.subr.mxu0 0.0
    %702 = vmatpush1.msra.mxu0 0.0
    %703 = vmatprep.subr.mxu0 0.0
    %704 = vmatpush1.msra.mxu0 0.0
    %705 = vmatprep.subr.mxu0 0.0
    %706 = vmatpush1.msra.mxu0 0.0
    %707 = vmatprep.subr.mxu0 0.0
    %708 = vmatpush1.msra.mxu0 0.0
    %709 = vmatprep.subr.mxu0 0.0
    %710 = vmatpush1.msra.mxu0 0.0
    %711 = vmatprep.subr.mxu0 0.0
    %712 = vmatpush1.msra.mxu0 0.0
    %713 = vmatprep.subr.mxu0 0.0
    %714 = vmatpush1.msra.mxu0 0.0
    %715 = vmatprep.subr.mxu0 0.0
    %716 = vmatpush1.msra.mxu0 0.0
    %717 = vmatprep.subr.mxu0 0.0
    %718 = vmatpush1.msra.mxu0 0.0
    %719 = vmatprep.subr.mxu0 0.0
    %720 = vmatpush1.msra.mxu0 0.0
    %721 = vmatprep.mubr.f32.mxu0 0.0
    %722 = vmatmul.mubr.f32.gmra.mrb[0].mxu0 %v593
    %v723 = vpop.f32.mrb[0].mxu0
    %v724 = vadd.f32 0.0, %v723
    %v725 = vpop.f32.mrb[0].mxu0
    %v726 = vadd.f32 0.0, %v725
    %727 = vmatprep.mubr.f32.mxu0 0.0
    %728 = vmatmul.mubr.f32.gmra.mrb[0].mxu0 %v594
    %v729 = vpop.f32.mrb[0].mxu0
    %v730 = vadd.f32 0.0, %v729
    %v731 = vpop.f32.mrb[0].mxu0
    %v732 = vadd.f32 0.0, %v731
    %733 = vmatprep.mubr.f32.mxu0 0.0
    %734 = vmatmul.mubr.f32.gmra.mrb[0].mxu0 %v595
    %v735 = vpop.f32.mrb[0].mxu0
    %v736 = vadd.f32 0.0, %v735
    %v737 = vpop.f32.mrb[0].mxu0
    %v738 = vadd.f32 0.0, %v737
    %739 = vmatprep.mubr.f32.mxu0 0.0
    %740 = vmatmul.mubr.f32.gmra.mrb[0].mxu0 %v596
    %v741 = vpop.f32.mrb[0].mxu0
    %v742 = vadd.f32 0.0, %v741
    %v743 = vpop.f32.mrb[0].mxu0
    %v744 = vadd.f32 0.0, %v743
    %745 = vmatprep.mubr.f32.mxu0 0.0
    %746 = vmatmul.mubr.f32.gmra.mrb[0].mxu0 %v597
    %v747 = vpop.f32.mrb[0].mxu0
    %v748 = vadd.f32 0.0, %v747
    %v749 = vpop.f32.mrb[0].mxu0
    %v750 = vadd.f32 0.0, %v749
    %751 = vmatprep.mubr.f32.mxu0 0.0
    %752 = vmatmul.mubr.f32.gmra.mrb[0].mxu0 %v598
    %v753 = vpop.f32.mrb[0].mxu0
    %v754 = vadd.f32 0.0, %v753
    %v755 = vpop.f32.mrb[0].mxu0
    %v756 = vadd.f32 0.0, %v755
    %757 = vmatprep.mubr.f32.mxu0 0.0
    %758 = vmatmul.mubr.f32.gmra.mrb[0].mxu0 %v599
    %v759 = vpop.f32.mrb[0].mxu0
    %v760 = vadd.f32 0.0, %v759
    %v761 = vpop.f32.mrb[0].mxu0
    %v762 = vadd.f32 0.0, %v761
    %763 = vmatprep.mubr.f32.mxu0 0.0
    %764 = vmatmul.mubr.f32.gmra.mrb[0].mxu0 %v600
    %v765 = vpop.f32.mrb[0].mxu0
    %v766 = vadd.f32 0.0, %v765
    %v767 = vpop.f32.mrb[0].mxu0
    %v768 = vadd.f32 0.0, %v767
    %769 = vmatprep.mubr.f32.mxu0 0.0
    %770 = vmatmul.mubr.f32.gmra.mrb[0].mxu0 %v601
    %v771 = vpop.f32.mrb[0].mxu0
    %v772 = vadd.f32 0.0, %v771
    %v773 = vpop.f32.mrb[0].mxu0
    %v774 = vadd.f32 0.0, %v773
    %775 = vmatprep.mubr.f32.mxu0 0.0
    %776 = vmatmul.mubr.f32.gmra.mrb[0].mxu0 %v602
    %v777 = vpop.f32.mrb[0].mxu0
    %v778 = vadd.f32 0.0, %v777
    %v779 = vpop.f32.mrb[0].mxu0
    %v780 = vadd.f32 0.0, %v779
    %781 = vmatprep.mubr.f32.mxu0 0.0
    %782 = vmatmul.mubr.f32.gmra.mrb[0].mxu0 %v603
    %v783 = vpop.f32.mrb[0].mxu0
    %v784 = vadd.f32 0.0, %v783
    %v785 = vpop.f32.mrb[0].mxu0
    %v786 = vadd.f32 0.0, %v785
    %787 = vmatprep.mubr.f32.mxu0 0.0
    %788 = vmatmul.mubr.f32.gmra.mrb[0].mxu0 %v604
    %v789 = vpop.f32.mrb[0].mxu0
    %v790 = vadd.f32 0.0, %v789
    %v791 = vpop.f32.mrb[0].mxu0
    %v792 = vadd.f32 0.0, %v791
    %793 = vmatprep.mubr.f32.mxu0 0.0
    %794 = vmatmul.mubr.f32.gmra.mrb[0].mxu0 %v605
    %v795 = vpop.f32.mrb[0].mxu0
    %v796 = vadd.f32 0.0, %v795
    %v797 = vpop.f32.mrb[0].mxu0
    %v798 = vadd.f32 0.0, %v797
    %799 = vmatprep.mubr.f32.mxu0 0.0
    %800 = vmatmul.mubr.f32.gmra.mrb[0].mxu0 %v606
    %v801 = vpop.f32.mrb[0].mxu0
    %v802 = vadd.f32 0.0, %v801
    %v803 = vpop.f32.mrb[0].mxu0
    %v804 = vadd.f32 0.0, %v803
    %805 = vmatprep.mubr.f32.mxu0 0.0
    %806 = vmatmul.mubr.f32.gmra.mrb[0].mxu0 %v607
    %v807 = vpop.f32.mrb[0].mxu0
    %v808 = vadd.f32 0.0, %v807
    %v809 = vpop.f32.mrb[0].mxu0
    %v810 = vadd.f32 0.0, %v809
    %811 = vmatprep.mubr.f32.mxu0 0.0
    %812 = vmatmul.mubr.f32.gmra.mrb[0].mxu0 %v608
    %v813 = vpop.f32.mrb[0].mxu0
    %v814 = vadd.f32 0.0, %v813
    %v815 = vpop.f32.mrb[0].mxu0
    %v816 = vadd.f32 0.0, %v815
    %817 = vmatprep.mubr.f32.mxu0 0.0
    %818 = vmatmul.mubr.f32.gmra.mrb[0].mxu0 %v609
    %v819 = vpop.f32.mrb[0].mxu0
    %v820 = vadd.f32 0.0, %v819
    %v821 = vpop.f32.mrb[0].mxu0
    %v822 = vadd.f32 0.0, %v821
    %823 = vmatprep.mubr.f32.mxu0 0.0
    %824 = vmatmul.mubr.f32.gmra.mrb[0].mxu0 %v610
    %v825 = vpop.f32.mrb[0].mxu0
    %v826 = vadd.f32 0.0, %v825
    %v827 = vpop.f32.mrb[0].mxu0
    %v828 = vadd.f32 0.0, %v827
    %829 = vmatprep.mubr.f32.mxu0 0.0
    %830 = vmatmul.mubr.f32.gmra.mrb[0].mxu0 %v611
    %v831 = vpop.f32.mrb[0].mxu0
    %v832 = vadd.f32 0.0, %v831
    %v833 = vpop.f32.mrb[0].mxu0
    %v834 = vadd.f32 0.0, %v833
    %835 = vmatprep.mubr.f32.mxu0 0.0
    %836 = vmatmul.mubr.f32.gmra.mrb[0].mxu0 %v612
    %v837 = vpop.f32.mrb[0].mxu0
    %v838 = vadd.f32 0.0, %v837
    %v839 = vpop.f32.mrb[0].mxu0
    %v840 = vadd.f32 0.0, %v839
    %841 = vmatprep.mubr.f32.mxu0 0.0
    %842 = vmatmul.mubr.f32.gmra.mrb[0].mxu0 %v613
    %v843 = vpop.f32.mrb[0].mxu0
    %v844 = vadd.f32 0.0, %v843
    %v845 = vpop.f32.mrb[0].mxu0
    %v846 = vadd.f32 0.0, %v845
    %847 = vmatprep.mubr.f32.mxu0 0.0
    %848 = vmatmul.mubr.f32.gmra.mrb[0].mxu0 %v614
    %v849 = vpop.f32.mrb[0].mxu0
    %v850 = vadd.f32 0.0, %v849
    %v851 = vpop.f32.mrb[0].mxu0
    %v852 = vadd.f32 0.0, %v851
    %853 = vmatprep.mubr.f32.mxu0 0.0
    %854 = vmatmul.mubr.f32.gmra.mrb[0].mxu0 %v615
    %v855 = vpop.f32.mrb[0].mxu0
    %v856 = vadd.f32 0.0, %v855
    %v857 = vpop.f32.mrb[0].mxu0
    %v858 = vadd.f32 0.0, %v857
    %859 = vmatprep.mubr.f32.mxu0 0.0
    %860 = vmatmul.mubr.f32.gmra.mrb[0].mxu0 %v616
    %v861 = vpop.f32.mrb[0].mxu0
    %v862 = vadd.f32 0.0, %v861
    %v863 = vpop.f32.mrb[0].mxu0
    %v864 = vadd.f32 0.0, %v863
    %865 = vmatprep.mubr.f32.mxu0 0.0
    %866 = vmatmul.mubr.f32.gmra.mrb[0].mxu0 %v617
    %v867 = vpop.f32.mrb[0].mxu0
    %v868 = vadd.f32 0.0, %v867
    %v869 = vpop.f32.mrb[0].mxu0
    %v870 = vadd.f32 0.0, %v869
    %871 = vmatprep.mubr.f32.mxu0 0.0
    %872 = vmatmul.mubr.f32.gmra.mrb[0].mxu0 %v618
    %v873 = vpop.f32.mrb[0].mxu0
    %v874 = vadd.f32 0.0, %v873
    %v875 = vpop.f32.mrb[0].mxu0
    %v876 = vadd.f32 0.0, %v875
    %877 = vmatprep.mubr.f32.mxu0 0.0
    %878 = vmatmul.mubr.f32.gmra.mrb[0].mxu0 %v619
    %v879 = vpop.f32.mrb[0].mxu0
    %v880 = vadd.f32 0.0, %v879
    %v881 = vpop.f32.mrb[0].mxu0
    %v882 = vadd.f32 0.0, %v881
    %883 = vmatprep.mubr.f32.mxu0 0.0
    %884 = vmatmul.mubr.f32.gmra.mrb[0].mxu0 %v620
    %v885 = vpop.f32.mrb[0].mxu0
    %v886 = vadd.f32 0.0, %v885
    %v887 = vpop.f32.mrb[0].mxu0
    %v888 = vadd.f32 0.0, %v887
    %889 = vmatprep.mubr.f32.mxu0 0.0
    %890 = vmatmul.mubr.f32.gmra.mrb[0].mxu0 %v621
    %v891 = vpop.f32.mrb[0].mxu0
    %v892 = vadd.f32 0.0, %v891
    %v893 = vpop.f32.mrb[0].mxu0
    %v894 = vadd.f32 0.0, %v893
    %895 = vmatprep.mubr.f32.mxu0 0.0
    %896 = vmatmul.mubr.f32.gmra.mrb[0].mxu0 %v622
    %v897 = vpop.f32.mrb[0].mxu0
    %v898 = vadd.f32 0.0, %v897
    %v899 = vpop.f32.mrb[0].mxu0
    %v900 = vadd.f32 0.0, %v899
    %901 = vmatprep.mubr.f32.mxu0 0.0
    %902 = vmatmul.mubr.f32.gmra.mrb[0].mxu0 %v623
    %v903 = vpop.f32.mrb[0].mxu0
    %v904 = vadd.f32 0.0, %v903
    %v905 = vpop.f32.mrb[0].mxu0
    %v906 = vadd.f32 0.0, %v905
    %907 = vmatprep.mubr.f32.mxu0 0.0
    %908 = vmatmul.mubr.f32.gmra.mrb[0].mxu0 %v624
    %v909 = vpop.f32.mrb[0].mxu0
    %v910 = vadd.f32 0.0, %v909
    %v911 = vpop.f32.mrb[0].mxu0
    %v912 = vadd.f32 0.0, %v911
    %913 = vdwg.mxu0
    %v914 = vld [vmem:[#allocation5 + $0x200] sm:$0xff]
    %v915 = vld [vmem:[#allocation5 + $0x208] sm:$0xff]
    %v916 = vld [vmem:[#allocation5 + $0x210] sm:$0xff]
    %v917 = vld [vmem:[#allocation5 + $0x218] sm:$0xff]
    %v918 = vld [vmem:[#allocation5 + $0x220] sm:$0xff]
    %v919 = vld [vmem:[#allocation5 + $0x228] sm:$0xff]
    %v920 = vld [vmem:[#allocation5 + $0x230] sm:$0xff]
    %v921 = vld [vmem:[#allocation5 + $0x238] sm:$0xff]
    %v922 = vld [vmem:[#allocation5 + $0x240] sm:$0xff]
    %v923 = vld [vmem:[#allocation5 + $0x248] sm:$0xff]
    %v924 = vld [vmem:[#allocation5 + $0x250] sm:$0xff]
    %v925 = vld [vmem:[#allocation5 + $0x258] sm:$0xff]
    %v926 = vld [vmem:[#allocation5 + $0x260] sm:$0xff]
    %v927 = vld [vmem:[#allocation5 + $0x268] sm:$0xff]
    %v928 = vld [vmem:[#allocation5 + $0x270] sm:$0xff]
    %v929 = vld [vmem:[#allocation5 + $0x278] sm:$0xff]
    %v930 = vld [vmem:[#allocation5 + $0x280] sm:$0xff]
    %v931 = vld [vmem:[#allocation5 + $0x288] sm:$0xff]
    %v932 = vld [vmem:[#allocation5 + $0x290] sm:$0xff]
    %v933 = vld [vmem:[#allocation5 + $0x298] sm:$0xff]
    %v934 = vld [vmem:[#allocation5 + $0x2a0] sm:$0xff]
    %v935 = vld [vmem:[#allocation5 + $0x2a8] sm:$0xff]
    %v936 = vld [vmem:[#allocation5 + $0x2b0] sm:$0xff]
    %v937 = vld [vmem:[#allocation5 + $0x2b8] sm:$0xff]
    %v938 = vld [vmem:[#allocation5 + $0x2c0] sm:$0xff]
    %v939 = vld [vmem:[#allocation5 + $0x2c8] sm:$0xff]
    %v940 = vld [vmem:[#allocation5 + $0x2d0] sm:$0xff]
    %v941 = vld [vmem:[#allocation5 + $0x2d8] sm:$0xff]
    %v942 = vld [vmem:[#allocation5 + $0x2e0] sm:$0xff]
    %v943 = vld [vmem:[#allocation5 + $0x2e8] sm:$0xff]
    %v944 = vld [vmem:[#allocation5 + $0x2f0] sm:$0xff]
    %v945 = vld [vmem:[#allocation5 + $0x2f8] sm:$0xff]
    %v947 = vlaneseq
    %v948 = vshrl.u32 %v947, 7
    %v949 = vsub.s32 0, %v948
    %v950 = vrot.slane %v75, %v949
    %v951 = vlaneseq
    %v952 = vshrl.u32 %v951, 7
    %v953 = vsub.s32 1, %v952
    %v954 = vrot.slane %v75, %v953
    %957 = vmatprep.subr.mxu0 %v915
    %958 = vmatpush1.msra.mxu0 %v914
    %959 = vmatprep.subr.mxu0 %v917
    %960 = vmatpush1.msra.mxu0 %v916
    %961 = vmatprep.subr.mxu0 %v919
    %962 = vmatpush1.msra.mxu0 %v918
    %963 = vmatprep.subr.mxu0 %v921
    %964 = vmatpush1.msra.mxu0 %v920
    %965 = vmatprep.subr.mxu0 %v923
    %966 = vmatpush1.msra.mxu0 %v922
    %967 = vmatprep.subr.mxu0 %v925
    %968 = vmatpush1.msra.mxu0 %v924
    %969 = vmatprep.subr.mxu0 %v927
    %970 = vmatpush1.msra.mxu0 %v926
    %971 = vmatprep.subr.mxu0 %v929
    %972 = vmatpush1.msra.mxu0 %v928
    %973 = vmatprep.subr.mxu0 %v931
    %974 = vmatpush1.msra.mxu0 %v930
    %975 = vmatprep.subr.mxu0 %v933
    %976 = vmatpush1.msra.mxu0 %v932
    %977 = vmatprep.subr.mxu0 %v935
    %978 = vmatpush1.msra.mxu0 %v934
    %979 = vmatprep.subr.mxu0 %v937
    %980 = vmatpush1.msra.mxu0 %v936
    %981 = vmatprep.subr.mxu0 %v939
    %982 = vmatpush1.msra.mxu0 %v938
    %983 = vmatprep.subr.mxu0 %v941
    %984 = vmatpush1.msra.mxu0 %v940
    %985 = vmatprep.subr.mxu0 %v943
    %986 = vmatpush1.msra.mxu0 %v942
    %987 = vmatprep.subr.mxu0 %v945
    %988 = vmatpush1.msra.mxu0 %v944
    %989 = vmatprep.subr.mxu0 0.0
    %990 = vmatpush1.msra.mxu0 0.0
    %991 = vmatprep.subr.mxu0 0.0
    %992 = vmatpush1.msra.mxu0 0.0
    %993 = vmatprep.subr.mxu0 0.0
    %994 = vmatpush1.msra.mxu0 0.0
    %995 = vmatprep.subr.mxu0 0.0
    %996 = vmatpush1.msra.mxu0 0.0
    %997 = vmatprep.subr.mxu0 0.0
    %998 = vmatpush1.msra.mxu0 0.0
    %999 = vmatprep.subr.mxu0 0.0
    %1000 = vmatpush1.msra.mxu0 0.0
    %1001 = vmatprep.subr.mxu0 0.0
    %1002 = vmatpush1.msra.mxu0 0.0
    %1003 = vmatprep.subr.mxu0 0.0
    %1004 = vmatpush1.msra.mxu0 0.0
    %1005 = vmatprep.subr.mxu0 0.0
    %1006 = vmatpush1.msra.mxu0 0.0
    %1007 = vmatprep.subr.mxu0 0.0
    %1008 = vmatpush1.msra.mxu0 0.0
    %1009 = vmatprep.subr.mxu0 0.0
    %1010 = vmatpush1.msra.mxu0 0.0
    %1011 = vmatprep.subr.mxu0 0.0
    %1012 = vmatpush1.msra.mxu0 0.0
    %1013 = vmatprep.subr.mxu0 0.0
    %1014 = vmatpush1.msra.mxu0 0.0
    %1015 = vmatprep.subr.mxu0 0.0
    %1016 = vmatpush1.msra.mxu0 0.0
    %1017 = vmatprep.subr.mxu0 0.0
    %1018 = vmatpush1.msra.mxu0 0.0
    %1019 = vmatprep.subr.mxu0 0.0
    %1020 = vmatpush1.msra.mxu0 0.0
    %1021 = vmatprep.mubr.f32.mxu0 0.0
    %1022 = vmatmul.mubr.f32.gmra.mrb[0].mxu0 %v40
    %v1023 = vpop.f32.mrb[0].mxu0
    %v1024 = vadd.f32 %v950, %v1023
    %v1025 = vpop.f32.mrb[0].mxu0
    %v1026 = vadd.f32 %v954, %v1025
    %1027 = vmatprep.mubr.f32.mxu0 0.0
    %1028 = vmatmul.mubr.f32.gmra.mrb[0].mxu0 %v41
    %v1029 = vpop.f32.mrb[0].mxu0
    %v1030 = vadd.f32 %v950, %v1029
    %v1031 = vpop.f32.mrb[0].mxu0
    %v1032 = vadd.f32 %v954, %v1031
    %1033 = vmatprep.mubr.f32.mxu0 0.0
    %1034 = vmatmul.mubr.f32.gmra.mrb[0].mxu0 %v42
    %v1035 = vpop.f32.mrb[0].mxu0
    %v1036 = vadd.f32 %v950, %v1035
    %v1037 = vpop.f32.mrb[0].mxu0
    %v1038 = vadd.f32 %v954, %v1037
    %1039 = vmatprep.mubr.f32.mxu0 0.0
    %1040 = vmatmul.mubr.f32.gmra.mrb[0].mxu0 %v43
    %v1041 = vpop.f32.mrb[0].mxu0
    %v1042 = vadd.f32 %v950, %v1041
    %v1043 = vpop.f32.mrb[0].mxu0
    %v1044 = vadd.f32 %v954, %v1043
    %1045 = vmatprep.mubr.f32.mxu0 0.0
    %1046 = vmatmul.mubr.f32.gmra.mrb[0].mxu0 %v44
    %v1047 = vpop.f32.mrb[0].mxu0
    %v1048 = vadd.f32 %v950, %v1047
    %v1049 = vpop.f32.mrb[0].mxu0
    %v1050 = vadd.f32 %v954, %v1049
    %1051 = vmatprep.mubr.f32.mxu0 0.0
    %1052 = vmatmul.mubr.f32.gmra.mrb[0].mxu0 %v45
    %v1053 = vpop.f32.mrb[0].mxu0
    %v1054 = vadd.f32 %v950, %v1053
    %v1055 = vpop.f32.mrb[0].mxu0
    %v1056 = vadd.f32 %v954, %v1055
    %1057 = vmatprep.mubr.f32.mxu0 0.0
    %1058 = vmatmul.mubr.f32.gmra.mrb[0].mxu0 %v46
    %v1059 = vpop.f32.mrb[0].mxu0
    %v1060 = vadd.f32 %v950, %v1059
    %v1061 = vpop.f32.mrb[0].mxu0
    %v1062 = vadd.f32 %v954, %v1061
    %1063 = vmatprep.mubr.f32.mxu0 0.0
    %1064 = vmatmul.mubr.f32.gmra.mrb[0].mxu0 %v47
    %v1065 = vpop.f32.mrb[0].mxu0
    %v1066 = vadd.f32 %v950, %v1065
    %v1067 = vpop.f32.mrb[0].mxu0
    %v1068 = vadd.f32 %v954, %v1067
    %1069 = vmatprep.mubr.f32.mxu0 0.0
    %1070 = vmatmul.mubr.f32.gmra.mrb[0].mxu0 %v48
    %v1071 = vpop.f32.mrb[0].mxu0
    %v1072 = vadd.f32 %v950, %v1071
    %v1073 = vpop.f32.mrb[0].mxu0
    %v1074 = vadd.f32 %v954, %v1073
    %1075 = vmatprep.mubr.f32.mxu0 0.0
    %1076 = vmatmul.mubr.f32.gmra.mrb[0].mxu0 %v49
    %v1077 = vpop.f32.mrb[0].mxu0
    %v1078 = vadd.f32 %v950, %v1077
    %v1079 = vpop.f32.mrb[0].mxu0
    %v1080 = vadd.f32 %v954, %v1079
    %1081 = vmatprep.mubr.f32.mxu0 0.0
    %1082 = vmatmul.mubr.f32.gmra.mrb[0].mxu0 %v50
    %v1083 = vpop.f32.mrb[0].mxu0
    %v1084 = vadd.f32 %v950, %v1083
    %v1085 = vpop.f32.mrb[0].mxu0
    %v1086 = vadd.f32 %v954, %v1085
    %1087 = vmatprep.mubr.f32.mxu0 0.0
    %1088 = vmatmul.mubr.f32.gmra.mrb[0].mxu0 %v51
    %v1089 = vpop.f32.mrb[0].mxu0
    %v1090 = vadd.f32 %v950, %v1089
    %v1091 = vpop.f32.mrb[0].mxu0
    %v1092 = vadd.f32 %v954, %v1091
    %1093 = vmatprep.mubr.f32.mxu0 0.0
    %1094 = vmatmul.mubr.f32.gmra.mrb[0].mxu0 %v52
    %v1095 = vpop.f32.mrb[0].mxu0
    %v1096 = vadd.f32 %v950, %v1095
    %v1097 = vpop.f32.mrb[0].mxu0
    %v1098 = vadd.f32 %v954, %v1097
    %1099 = vmatprep.mubr.f32.mxu0 0.0
    %1100 = vmatmul.mubr.f32.gmra.mrb[0].mxu0 %v53
    %v1101 = vpop.f32.mrb[0].mxu0
    %v1102 = vadd.f32 %v950, %v1101
    %v1103 = vpop.f32.mrb[0].mxu0
    %v1104 = vadd.f32 %v954, %v1103
    %1105 = vmatprep.mubr.f32.mxu0 0.0
    %1106 = vmatmul.mubr.f32.gmra.mrb[0].mxu0 %v54
    %v1107 = vpop.f32.mrb[0].mxu0
    %v1108 = vadd.f32 %v950, %v1107
    %v1109 = vpop.f32.mrb[0].mxu0
    %v1110 = vadd.f32 %v954, %v1109
    %1111 = vmatprep.mubr.f32.mxu0 0.0
    %1112 = vmatmul.mubr.f32.gmra.mrb[0].mxu0 %v55
    %v1113 = vpop.f32.mrb[0].mxu0
    %v1114 = vadd.f32 %v950, %v1113
    %v1115 = vpop.f32.mrb[0].mxu0
    %v1116 = vadd.f32 %v954, %v1115
    %1117 = vmatprep.mubr.f32.mxu0 0.0
    %1118 = vmatmul.mubr.f32.gmra.mrb[0].mxu0 %v56
    %v1119 = vpop.f32.mrb[0].mxu0
    %v1120 = vadd.f32 %v950, %v1119
    %v1121 = vpop.f32.mrb[0].mxu0
    %v1122 = vadd.f32 %v954, %v1121
    %1123 = vmatprep.mubr.f32.mxu0 0.0
    %1124 = vmatmul.mubr.f32.gmra.mrb[0].mxu0 %v57
    %v1125 = vpop.f32.mrb[0].mxu0
    %v1126 = vadd.f32 %v950, %v1125
    %v1127 = vpop.f32.mrb[0].mxu0
    %v1128 = vadd.f32 %v954, %v1127
    %1129 = vmatprep.mubr.f32.mxu0 0.0
    %1130 = vmatmul.mubr.f32.gmra.mrb[0].mxu0 %v58
    %v1131 = vpop.f32.mrb[0].mxu0
    %v1132 = vadd.f32 %v950, %v1131
    %v1133 = vpop.f32.mrb[0].mxu0
    %v1134 = vadd.f32 %v954, %v1133
    %1135 = vmatprep.mubr.f32.mxu0 0.0
    %1136 = vmatmul.mubr.f32.gmra.mrb[0].mxu0 %v59
    %v1137 = vpop.f32.mrb[0].mxu0
    %v1138 = vadd.f32 %v950, %v1137
    %v1139 = vpop.f32.mrb[0].mxu0
    %v1140 = vadd.f32 %v954, %v1139
    %1141 = vmatprep.mubr.f32.mxu0 0.0
    %1142 = vmatmul.mubr.f32.gmra.mrb[0].mxu0 %v60
    %v1143 = vpop.f32.mrb[0].mxu0
    %v1144 = vadd.f32 %v950, %v1143
    %v1145 = vpop.f32.mrb[0].mxu0
    %v1146 = vadd.f32 %v954, %v1145
    %1147 = vmatprep.mubr.f32.mxu0 0.0
    %1148 = vmatmul.mubr.f32.gmra.mrb[0].mxu0 %v61
    %v1149 = vpop.f32.mrb[0].mxu0
    %v1150 = vadd.f32 %v950, %v1149
    %v1151 = vpop.f32.mrb[0].mxu0
    %v1152 = vadd.f32 %v954, %v1151
    %1153 = vmatprep.mubr.f32.mxu0 0.0
    %1154 = vmatmul.mubr.f32.gmra.mrb[0].mxu0 %v62
    %v1155 = vpop.f32.mrb[0].mxu0
    %v1156 = vadd.f32 %v950, %v1155
    %v1157 = vpop.f32.mrb[0].mxu0
    %v1158 = vadd.f32 %v954, %v1157
    %1159 = vmatprep.mubr.f32.mxu0 0.0
    %1160 = vmatmul.mubr.f32.gmra.mrb[0].mxu0 %v63
    %v1161 = vpop.f32.mrb[0].mxu0
    %v1162 = vadd.f32 %v950, %v1161
    %v1163 = vpop.f32.mrb[0].mxu0
    %v1164 = vadd.f32 %v954, %v1163
    %1165 = vmatprep.mubr.f32.mxu0 0.0
    %1166 = vmatmul.mubr.f32.gmra.mrb[0].mxu0 %v64
    %v1167 = vpop.f32.mrb[0].mxu0
    %v1168 = vadd.f32 %v950, %v1167
    %v1169 = vpop.f32.mrb[0].mxu0
    %v1170 = vadd.f32 %v954, %v1169
    %1171 = vmatprep.mubr.f32.mxu0 0.0
    %1172 = vmatmul.mubr.f32.gmra.mrb[0].mxu0 %v65
    %v1173 = vpop.f32.mrb[0].mxu0
    %v1174 = vadd.f32 %v950, %v1173
    %v1175 = vpop.f32.mrb[0].mxu0
    %v1176 = vadd.f32 %v954, %v1175
    %1177 = vmatprep.mubr.f32.mxu0 0.0
    %1178 = vmatmul.mubr.f32.gmra.mrb[0].mxu0 %v66
    %v1179 = vpop.f32.mrb[0].mxu0
    %v1180 = vadd.f32 %v950, %v1179
    %v1181 = vpop.f32.mrb[0].mxu0
    %v1182 = vadd.f32 %v954, %v1181
    %1183 = vmatprep.mubr.f32.mxu0 0.0
    %1184 = vmatmul.mubr.f32.gmra.mrb[0].mxu0 %v67
    %v1185 = vpop.f32.mrb[0].mxu0
    %v1186 = vadd.f32 %v950, %v1185
    %v1187 = vpop.f32.mrb[0].mxu0
    %v1188 = vadd.f32 %v954, %v1187
    %1189 = vmatprep.mubr.f32.mxu0 0.0
    %1190 = vmatmul.mubr.f32.gmra.mrb[0].mxu0 %v68
    %v1191 = vpop.f32.mrb[0].mxu0
    %v1192 = vadd.f32 %v950, %v1191
    %v1193 = vpop.f32.mrb[0].mxu0
    %v1194 = vadd.f32 %v954, %v1193
    %1195 = vmatprep.mubr.f32.mxu0 0.0
    %1196 = vmatmul.mubr.f32.gmra.mrb[0].mxu0 %v69
    %v1197 = vpop.f32.mrb[0].mxu0
    %v1198 = vadd.f32 %v950, %v1197
    %v1199 = vpop.f32.mrb[0].mxu0
    %v1200 = vadd.f32 %v954, %v1199
    %1201 = vmatprep.mubr.f32.mxu0 0.0
    %1202 = vmatmul.mubr.f32.gmra.mrb[0].mxu0 %v70
    %v1203 = vpop.f32.mrb[0].mxu0
    %v1204 = vadd.f32 %v950, %v1203
    %v1205 = vpop.f32.mrb[0].mxu0
    %v1206 = vadd.f32 %v954, %v1205
    %1207 = vmatprep.mubr.f32.mxu0 0.0
    %1208 = vmatmul.mubr.f32.gmra.mrb[0].mxu0 %v71
    %v1209 = vpop.f32.mrb[0].mxu0
    %v1210 = vadd.f32 %v950, %v1209
    %v1211 = vpop.f32.mrb[0].mxu0
    %v1212 = vadd.f32 %v954, %v1211
    %1213 = vdwg.mxu0
    %v1214 = vtanh.pop %v1024
    %v1215 = vtanh.pop %v1026
    %v1216 = vtanh.pop %v1030
    %v1217 = vtanh.pop %v1032
    %v1218 = vtanh.pop %v1036
    %v1219 = vtanh.pop %v1038
    %v1220 = vtanh.pop %v1042
    %v1221 = vtanh.pop %v1044
    %v1222 = vtanh.pop %v1048
    %v1223 = vtanh.pop %v1050
    %v1224 = vtanh.pop %v1054
    %v1225 = vtanh.pop %v1056
    %v1226 = vtanh.pop %v1060
    %v1227 = vtanh.pop %v1062
    %v1228 = vtanh.pop %v1066
    %v1229 = vtanh.pop %v1068
    %v1230 = vtanh.pop %v1072
    %v1231 = vtanh.pop %v1074
    %v1232 = vtanh.pop %v1078
    %v1233 = vtanh.pop %v1080
    %v1234 = vtanh.pop %v1084
    %v1235 = vtanh.pop %v1086
    %v1236 = vtanh.pop %v1090
    %v1237 = vtanh.pop %v1092
    %v1238 = vtanh.pop %v1096
    %v1239 = vtanh.pop %v1098
    %v1240 = vtanh.pop %v1102
    %v1241 = vtanh.pop %v1104
    %v1242 = vtanh.pop %v1108
    %v1243 = vtanh.pop %v1110
    %v1244 = vtanh.pop %v1114
    %v1245 = vtanh.pop %v1116
    %v1246 = vtanh.pop %v1120
    %v1247 = vtanh.pop %v1122
    %v1248 = vtanh.pop %v1126
    %v1249 = vtanh.pop %v1128
    %v1250 = vtanh.pop %v1132
    %v1251 = vtanh.pop %v1134
    %v1252 = vtanh.pop %v1138
    %v1253 = vtanh.pop %v1140
    %v1254 = vtanh.pop %v1144
    %v1255 = vtanh.pop %v1146
    %v1256 = vtanh.pop %v1150
    %v1257 = vtanh.pop %v1152
    %v1258 = vtanh.pop %v1156
    %v1259 = vtanh.pop %v1158
    %v1260 = vtanh.pop %v1162
    %v1261 = vtanh.pop %v1164
    %v1262 = vtanh.pop %v1168
    %v1263 = vtanh.pop %v1170
    %v1264 = vtanh.pop %v1174
    %v1265 = vtanh.pop %v1176
    %v1266 = vtanh.pop %v1180
    %v1267 = vtanh.pop %v1182
    %v1268 = vtanh.pop %v1186
    %v1269 = vtanh.pop %v1188
    %v1270 = vtanh.pop %v1192
    %v1271 = vtanh.pop %v1194
    %v1272 = vtanh.pop %v1198
    %v1273 = vtanh.pop %v1200
    %v1274 = vtanh.pop %v1204
    %v1275 = vtanh.pop %v1206
    %v1276 = vtanh.pop %v1210
    %v1277 = vtanh.pop %v1212
    %v1278 = vld [vmem:[#allocation5 + $0x300] sm:$0xff]
    %v1279 = vld [vmem:[#allocation5 + $0x308] sm:$0xff]
    %v1280 = vld [vmem:[#allocation5 + $0x310] sm:$0xff]
    %v1281 = vld [vmem:[#allocation5 + $0x318] sm:$0xff]
    %v1282 = vld [vmem:[#allocation5 + $0x320] sm:$0xff]
    %v1283 = vld [vmem:[#allocation5 + $0x328] sm:$0xff]
    %v1284 = vld [vmem:[#allocation5 + $0x330] sm:$0xff]
    %v1285 = vld [vmem:[#allocation5 + $0x338] sm:$0xff]
    %v1286 = vld [vmem:[#allocation5 + $0x340] sm:$0xff]
    %v1287 = vld [vmem:[#allocation5 + $0x348] sm:$0xff]
    %v1288 = vld [vmem:[#allocation5 + $0x350] sm:$0xff]
    %v1289 = vld [vmem:[#allocation5 + $0x358] sm:$0xff]
    %v1290 = vld [vmem:[#allocation5 + $0x360] sm:$0xff]
    %v1291 = vld [vmem:[#allocation5 + $0x368] sm:$0xff]
    %v1292 = vld [vmem:[#allocation5 + $0x370] sm:$0xff]
    %v1293 = vld [vmem:[#allocation5 + $0x378] sm:$0xff]
    %v1294 = vld [vmem:[#allocation5 + $0x380] sm:$0xff]
    %v1295 = vld [vmem:[#allocation5 + $0x388] sm:$0xff]
    %v1296 = vld [vmem:[#allocation5 + $0x390] sm:$0xff]
    %v1297 = vld [vmem:[#allocation5 + $0x398] sm:$0xff]
    %v1298 = vld [vmem:[#allocation5 + $0x3a0] sm:$0xff]
    %v1299 = vld [vmem:[#allocation5 + $0x3a8] sm:$0xff]
    %v1300 = vld [vmem:[#allocation5 + $0x3b0] sm:$0xff]
    %v1301 = vld [vmem:[#allocation5 + $0x3b8] sm:$0xff]
    %v1302 = vld [vmem:[#allocation5 + $0x3c0] sm:$0xff]
    %v1303 = vld [vmem:[#allocation5 + $0x3c8] sm:$0xff]
    %v1304 = vld [vmem:[#allocation5 + $0x3d0] sm:$0xff]
    %v1305 = vld [vmem:[#allocation5 + $0x3d8] sm:$0xff]
    %v1306 = vld [vmem:[#allocation5 + $0x3e0] sm:$0xff]
    %v1307 = vld [vmem:[#allocation5 + $0x3e8] sm:$0xff]
    %v1308 = vld [vmem:[#allocation5 + $0x3f0] sm:$0xff]
    %v1309 = vld [vmem:[#allocation5 + $0x3f8] sm:$0xff]
    %v1310 = vld [vmem:[#allocation5 + $0x400] sm:$0xff]
    %v1311 = vld [vmem:[#allocation5 + $0x408] sm:$0xff]
    %v1312 = vld [vmem:[#allocation5 + $0x410] sm:$0xff]
    %v1313 = vld [vmem:[#allocation5 + $0x418] sm:$0xff]
    %v1314 = vld [vmem:[#allocation5 + $0x420] sm:$0xff]
    %v1315 = vld [vmem:[#allocation5 + $0x428] sm:$0xff]
    %v1316 = vld [vmem:[#allocation5 + $0x430] sm:$0xff]
    %v1317 = vld [vmem:[#allocation5 + $0x438] sm:$0xff]
    %v1318 = vld [vmem:[#allocation5 + $0x440] sm:$0xff]
    %v1319 = vld [vmem:[#allocation5 + $0x448] sm:$0xff]
    %v1320 = vld [vmem:[#allocation5 + $0x450] sm:$0xff]
    %v1321 = vld [vmem:[#allocation5 + $0x458] sm:$0xff]
    %v1322 = vld [vmem:[#allocation5 + $0x460] sm:$0xff]
    %v1323 = vld [vmem:[#allocation5 + $0x468] sm:$0xff]
    %v1324 = vld [vmem:[#allocation5 + $0x470] sm:$0xff]
    %v1325 = vld [vmem:[#allocation5 + $0x478] sm:$0xff]
    %v1326 = vld [vmem:[#allocation5 + $0x480] sm:$0xff]
    %v1327 = vld [vmem:[#allocation5 + $0x488] sm:$0xff]
    %v1328 = vld [vmem:[#allocation5 + $0x490] sm:$0xff]
    %v1329 = vld [vmem:[#allocation5 + $0x498] sm:$0xff]
    %v1330 = vld [vmem:[#allocation5 + $0x4a0] sm:$0xff]
    %v1331 = vld [vmem:[#allocation5 + $0x4a8] sm:$0xff]
    %v1332 = vld [vmem:[#allocation5 + $0x4b0] sm:$0xff]
    %v1333 = vld [vmem:[#allocation5 + $0x4b8] sm:$0xff]
    %v1334 = vld [vmem:[#allocation5 + $0x4c0] sm:$0xff]
    %v1335 = vld [vmem:[#allocation5 + $0x4c8] sm:$0xff]
    %v1336 = vld [vmem:[#allocation5 + $0x4d0] sm:$0xff]
    %v1337 = vld [vmem:[#allocation5 + $0x4d8] sm:$0xff]
    %v1338 = vld [vmem:[#allocation5 + $0x4e0] sm:$0xff]
    %v1339 = vld [vmem:[#allocation5 + $0x4e8] sm:$0xff]
    %v1340 = vld [vmem:[#allocation5 + $0x4f0] sm:$0xff]
    %v1341 = vld [vmem:[#allocation5 + $0x4f8] sm:$0xff]
    %1342 = vmatprep.subr.mxu0 %v1279
    %1343 = vmatpush1.msra.mxu0 %v1278
    %1344 = vmatprep.subr.mxu0 %v1281
    %1345 = vmatpush1.msra.mxu0 %v1280
    %1346 = vmatprep.subr.mxu0 %v1283
    %1347 = vmatpush1.msra.mxu0 %v1282
    %1348 = vmatprep.subr.mxu0 %v1285
    %1349 = vmatpush1.msra.mxu0 %v1284
    %1350 = vmatprep.subr.mxu0 %v1287
    %1351 = vmatpush1.msra.mxu0 %v1286
    %1352 = vmatprep.subr.mxu0 %v1289
    %1353 = vmatpush1.msra.mxu0 %v1288
    %1354 = vmatprep.subr.mxu0 %v1291
    %1355 = vmatpush1.msra.mxu0 %v1290
    %1356 = vmatprep.subr.mxu0 %v1293
    %1357 = vmatpush1.msra.mxu0 %v1292
    %1358 = vmatprep.subr.mxu0 %v1295
    %1359 = vmatpush1.msra.mxu0 %v1294
    %1360 = vmatprep.subr.mxu0 %v1297
    %1361 = vmatpush1.msra.mxu0 %v1296
    %1362 = vmatprep.subr.mxu0 %v1299
    %1363 = vmatpush1.msra.mxu0 %v1298
    %1364 = vmatprep.subr.mxu0 %v1301
    %1365 = vmatpush1.msra.mxu0 %v1300
    %1366 = vmatprep.subr.mxu0 %v1303
    %1367 = vmatpush1.msra.mxu0 %v1302
    %1368 = vmatprep.subr.mxu0 %v1305
    %1369 = vmatpush1.msra.mxu0 %v1304
    %1370 = vmatprep.subr.mxu0 %v1307
    %1371 = vmatpush1.msra.mxu0 %v1306
    %1372 = vmatprep.subr.mxu0 %v1309
    %1373 = vmatpush1.msra.mxu0 %v1308
    %1374 = vmatprep.subr.mxu0 %v1311
    %1375 = vmatpush1.msra.mxu0 %v1310
    %1376 = vmatprep.subr.mxu0 %v1313
    %1377 = vmatpush1.msra.mxu0 %v1312
    %1378 = vmatprep.subr.mxu0 %v1315
    %1379 = vmatpush1.msra.mxu0 %v1314
    %1380 = vmatprep.subr.mxu0 %v1317
    %1381 = vmatpush1.msra.mxu0 %v1316
    %1382 = vmatprep.subr.mxu0 %v1319
    %1383 = vmatpush1.msra.mxu0 %v1318
    %1384 = vmatprep.subr.mxu0 %v1321
    %1385 = vmatpush1.msra.mxu0 %v1320
    %1386 = vmatprep.subr.mxu0 %v1323
    %1387 = vmatpush1.msra.mxu0 %v1322
    %1388 = vmatprep.subr.mxu0 %v1325
    %1389 = vmatpush1.msra.mxu0 %v1324
    %1390 = vmatprep.subr.mxu0 %v1327
    %1391 = vmatpush1.msra.mxu0 %v1326
    %1392 = vmatprep.subr.mxu0 %v1329
    %1393 = vmatpush1.msra.mxu0 %v1328
    %1394 = vmatprep.subr.mxu0 %v1331
    %1395 = vmatpush1.msra.mxu0 %v1330
    %1396 = vmatprep.subr.mxu0 %v1333
    %1397 = vmatpush1.msra.mxu0 %v1332
    %1398 = vmatprep.subr.mxu0 %v1335
    %1399 = vmatpush1.msra.mxu0 %v1334
    %1400 = vmatprep.subr.mxu0 %v1337
    %1401 = vmatpush1.msra.mxu0 %v1336
    %1402 = vmatprep.subr.mxu0 %v1339
    %1403 = vmatpush1.msra.mxu0 %v1338
    %1404 = vmatprep.subr.mxu0 %v1341
    %1405 = vmatpush1.msra.mxu0 %v1340
    %1406 = vmatprep.mubr.f32.mxu0 %v1215
    %1407 = vmatmul.mubr.f32.gmra.mrb[0].mxu0 %v1214
    %v1408 = vpop.f32.mrb[0].mxu0
    %v1409 = vadd.f32 %v724, %v1408
    %v1410 = vpop.f32.mrb[0].mxu0
    %v1411 = vadd.f32 %v726, %v1410
    %1412 = vmatprep.mubr.f32.mxu0 %v1217
    %1413 = vmatmul.mubr.f32.gmra.mrb[0].mxu0 %v1216
    %v1414 = vpop.f32.mrb[0].mxu0
    %v1415 = vadd.f32 %v730, %v1414
    %v1416 = vpop.f32.mrb[0].mxu0
    %v1417 = vadd.f32 %v732, %v1416
    %1418 = vmatprep.mubr.f32.mxu0 %v1219
    %1419 = vmatmul.mubr.f32.gmra.mrb[0].mxu0 %v1218
    %v1420 = vpop.f32.mrb[0].mxu0
    %v1421 = vadd.f32 %v736, %v1420
    %v1422 = vpop.f32.mrb[0].mxu0
    %v1423 = vadd.f32 %v738, %v1422
    %1424 = vmatprep.mubr.f32.mxu0 %v1221
    %1425 = vmatmul.mubr.f32.gmra.mrb[0].mxu0 %v1220
    %v1426 = vpop.f32.mrb[0].mxu0
    %v1427 = vadd.f32 %v742, %v1426
    %v1428 = vpop.f32.mrb[0].mxu0
    %v1429 = vadd.f32 %v744, %v1428
    %1430 = vmatprep.mubr.f32.mxu0 %v1223
    %1431 = vmatmul.mubr.f32.gmra.mrb[0].mxu0 %v1222
    %v1432 = vpop.f32.mrb[0].mxu0
    %v1433 = vadd.f32 %v748, %v1432
    %v1434 = vpop.f32.mrb[0].mxu0
    %v1435 = vadd.f32 %v750, %v1434
    %1436 = vmatprep.mubr.f32.mxu0 %v1225
    %1437 = vmatmul.mubr.f32.gmra.mrb[0].mxu0 %v1224
    %v1438 = vpop.f32.mrb[0].mxu0
    %v1439 = vadd.f32 %v754, %v1438
    %v1440 = vpop.f32.mrb[0].mxu0
    %v1441 = vadd.f32 %v756, %v1440
    %1442 = vmatprep.mubr.f32.mxu0 %v1227
    %1443 = vmatmul.mubr.f32.gmra.mrb[0].mxu0 %v1226
    %v1444 = vpop.f32.mrb[0].mxu0
    %v1445 = vadd.f32 %v760, %v1444
    %v1446 = vpop.f32.mrb[0].mxu0
    %v1447 = vadd.f32 %v762, %v1446
    %1448 = vmatprep.mubr.f32.mxu0 %v1229
    %1449 = vmatmul.mubr.f32.gmra.mrb[0].mxu0 %v1228
    %v1450 = vpop.f32.mrb[0].mxu0
    %v1451 = vadd.f32 %v766, %v1450
    %v1452 = vpop.f32.mrb[0].mxu0
    %v1453 = vadd.f32 %v768, %v1452
    %1454 = vmatprep.mubr.f32.mxu0 %v1231
    %1455 = vmatmul.mubr.f32.gmra.mrb[0].mxu0 %v1230
    %v1456 = vpop.f32.mrb[0].mxu0
    %v1457 = vadd.f32 %v772, %v1456
    %v1458 = vpop.f32.mrb[0].mxu0
    %v1459 = vadd.f32 %v774, %v1458
    %1460 = vmatprep.mubr.f32.mxu0 %v1233
    %1461 = vmatmul.mubr.f32.gmra.mrb[0].mxu0 %v1232
    %v1462 = vpop.f32.mrb[0].mxu0
    %v1463 = vadd.f32 %v778, %v1462
    %v1464 = vpop.f32.mrb[0].mxu0
    %v1465 = vadd.f32 %v780, %v1464
    %1466 = vmatprep.mubr.f32.mxu0 %v1235
    %1467 = vmatmul.mubr.f32.gmra.mrb[0].mxu0 %v1234
    %v1468 = vpop.f32.mrb[0].mxu0
    %v1469 = vadd.f32 %v784, %v1468
    %v1470 = vpop.f32.mrb[0].mxu0
    %v1471 = vadd.f32 %v786, %v1470
    %1472 = vmatprep.mubr.f32.mxu0 %v1237
    %1473 = vmatmul.mubr.f32.gmra.mrb[0].mxu0 %v1236
    %v1474 = vpop.f32.mrb[0].mxu0
    %v1475 = vadd.f32 %v790, %v1474
    %v1476 = vpop.f32.mrb[0].mxu0
    %v1477 = vadd.f32 %v792, %v1476
    %1478 = vmatprep.mubr.f32.mxu0 %v1239
    %1479 = vmatmul.mubr.f32.gmra.mrb[0].mxu0 %v1238
    %v1480 = vpop.f32.mrb[0].mxu0
    %v1481 = vadd.f32 %v796, %v1480
    %v1482 = vpop.f32.mrb[0].mxu0
    %v1483 = vadd.f32 %v798, %v1482
    %1484 = vmatprep.mubr.f32.mxu0 %v1241
    %1485 = vmatmul.mubr.f32.gmra.mrb[0].mxu0 %v1240
    %v1486 = vpop.f32.mrb[0].mxu0
    %v1487 = vadd.f32 %v802, %v1486
    %v1488 = vpop.f32.mrb[0].mxu0
    %v1489 = vadd.f32 %v804, %v1488
    %1490 = vmatprep.mubr.f32.mxu0 %v1243
    %1491 = vmatmul.mubr.f32.gmra.mrb[0].mxu0 %v1242
    %v1492 = vpop.f32.mrb[0].mxu0
    %v1493 = vadd.f32 %v808, %v1492
    %v1494 = vpop.f32.mrb[0].mxu0
    %v1495 = vadd.f32 %v810, %v1494
    %1496 = vmatprep.mubr.f32.mxu0 %v1245
    %1497 = vmatmul.mubr.f32.gmra.mrb[0].mxu0 %v1244
    %v1498 = vpop.f32.mrb[0].mxu0
    %v1499 = vadd.f32 %v814, %v1498
    %v1500 = vpop.f32.mrb[0].mxu0
    %v1501 = vadd.f32 %v816, %v1500
    %1502 = vmatprep.mubr.f32.mxu0 %v1247
    %1503 = vmatmul.mubr.f32.gmra.mrb[0].mxu0 %v1246
    %v1504 = vpop.f32.mrb[0].mxu0
    %v1505 = vadd.f32 %v820, %v1504
    %v1506 = vpop.f32.mrb[0].mxu0
    %v1507 = vadd.f32 %v822, %v1506
    %1508 = vmatprep.mubr.f32.mxu0 %v1249
    %1509 = vmatmul.mubr.f32.gmra.mrb[0].mxu0 %v1248
    %v1510 = vpop.f32.mrb[0].mxu0
    %v1511 = vadd.f32 %v826, %v1510
    %v1512 = vpop.f32.mrb[0].mxu0
    %v1513 = vadd.f32 %v828, %v1512
    %1514 = vmatprep.mubr.f32.mxu0 %v1251
    %1515 = vmatmul.mubr.f32.gmra.mrb[0].mxu0 %v1250
    %v1516 = vpop.f32.mrb[0].mxu0
    %v1517 = vadd.f32 %v832, %v1516
    %v1518 = vpop.f32.mrb[0].mxu0
    %v1519 = vadd.f32 %v834, %v1518
    %1520 = vmatprep.mubr.f32.mxu0 %v1253
    %1521 = vmatmul.mubr.f32.gmra.mrb[0].mxu0 %v1252
    %v1522 = vpop.f32.mrb[0].mxu0
    %v1523 = vadd.f32 %v838, %v1522
    %v1524 = vpop.f32.mrb[0].mxu0
    %v1525 = vadd.f32 %v840, %v1524
    %1526 = vmatprep.mubr.f32.mxu0 %v1255
    %1527 = vmatmul.mubr.f32.gmra.mrb[0].mxu0 %v1254
    %v1528 = vpop.f32.mrb[0].mxu0
    %v1529 = vadd.f32 %v844, %v1528
    %v1530 = vpop.f32.mrb[0].mxu0
    %v1531 = vadd.f32 %v846, %v1530
    %1532 = vmatprep.mubr.f32.mxu0 %v1257
    %1533 = vmatmul.mubr.f32.gmra.mrb[0].mxu0 %v1256
    %v1534 = vpop.f32.mrb[0].mxu0
    %v1535 = vadd.f32 %v850, %v1534
    %v1536 = vpop.f32.mrb[0].mxu0
    %v1537 = vadd.f32 %v852, %v1536
    %1538 = vmatprep.mubr.f32.mxu0 %v1259
    %1539 = vmatmul.mubr.f32.gmra.mrb[0].mxu0 %v1258
    %v1540 = vpop.f32.mrb[0].mxu0
    %v1541 = vadd.f32 %v856, %v1540
    %v1542 = vpop.f32.mrb[0].mxu0
    %v1543 = vadd.f32 %v858, %v1542
    %1544 = vmatprep.mubr.f32.mxu0 %v1261
    %1545 = vmatmul.mubr.f32.gmra.mrb[0].mxu0 %v1260
    %v1546 = vpop.f32.mrb[0].mxu0
    %v1547 = vadd.f32 %v862, %v1546
    %v1548 = vpop.f32.mrb[0].mxu0
    %v1549 = vadd.f32 %v864, %v1548
    %1550 = vmatprep.mubr.f32.mxu0 %v1263
    %1551 = vmatmul.mubr.f32.gmra.mrb[0].mxu0 %v1262
    %v1552 = vpop.f32.mrb[0].mxu0
    %v1553 = vadd.f32 %v868, %v1552
    %v1554 = vpop.f32.mrb[0].mxu0
    %v1555 = vadd.f32 %v870, %v1554
    %1556 = vmatprep.mubr.f32.mxu0 %v1265
    %1557 = vmatmul.mubr.f32.gmra.mrb[0].mxu0 %v1264
    %v1558 = vpop.f32.mrb[0].mxu0
    %v1559 = vadd.f32 %v874, %v1558
    %v1560 = vpop.f32.mrb[0].mxu0
    %v1561 = vadd.f32 %v876, %v1560
    %1562 = vmatprep.mubr.f32.mxu0 %v1267
    %1563 = vmatmul.mubr.f32.gmra.mrb[0].mxu0 %v1266
    %v1564 = vpop.f32.mrb[0].mxu0
    %v1565 = vadd.f32 %v880, %v1564
    %v1566 = vpop.f32.mrb[0].mxu0
    %v1567 = vadd.f32 %v882, %v1566
    %1568 = vmatprep.mubr.f32.mxu0 %v1269
    %1569 = vmatmul.mubr.f32.gmra.mrb[0].mxu0 %v1268
    %v1570 = vpop.f32.mrb[0].mxu0
    %v1571 = vadd.f32 %v886, %v1570
    %v1572 = vpop.f32.mrb[0].mxu0
    %v1573 = vadd.f32 %v888, %v1572
    %1574 = vmatprep.mubr.f32.mxu0 %v1271
    %1575 = vmatmul.mubr.f32.gmra.mrb[0].mxu0 %v1270
    %v1576 = vpop.f32.mrb[0].mxu0
    %v1577 = vadd.f32 %v892, %v1576
    %v1578 = vpop.f32.mrb[0].mxu0
    %v1579 = vadd.f32 %v894, %v1578
    %1580 = vmatprep.mubr.f32.mxu0 %v1273
    %1581 = vmatmul.mubr.f32.gmra.mrb[0].mxu0 %v1272
    %v1582 = vpop.f32.mrb[0].mxu0
    %v1583 = vadd.f32 %v898, %v1582
    %v1584 = vpop.f32.mrb[0].mxu0
    %v1585 = vadd.f32 %v900, %v1584
    %1586 = vmatprep.mubr.f32.mxu0 %v1275
    %1587 = vmatmul.mubr.f32.gmra.mrb[0].mxu0 %v1274
    %v1588 = vpop.f32.mrb[0].mxu0
    %v1589 = vadd.f32 %v904, %v1588
    %v1590 = vpop.f32.mrb[0].mxu0
    %v1591 = vadd.f32 %v906, %v1590
    %1592 = vmatprep.mubr.f32.mxu0 %v1277
    %1593 = vmatmul.mubr.f32.gmra.mrb[0].mxu0 %v1276
    %v1594 = vpop.f32.mrb[0].mxu0
    %v1595 = vadd.f32 %v910, %v1594
    %v1596 = vpop.f32.mrb[0].mxu0
    %v1597 = vadd.f32 %v912, %v1596
    %1598 = vdwg.mxu0
    %v1600 = vlaneseq
    %v1601 = vshrl.u32 %v1600, 7
    %v1602 = vsub.s32 0, %v1601
    %v1603 = vrot.slane %v77, %v1602
    %v1604 = vlaneseq
    %v1605 = vshrl.u32 %v1604, 7
    %v1606 = vsub.s32 1, %v1605
    %v1607 = vrot.slane %v77, %v1606
    %v1610 = vadd.f32 %v1409, %v1603
    %v1611 = vadd.f32 %v1411, %v1607
    %v1612 = vadd.f32 %v1415, %v1603
    %v1613 = vadd.f32 %v1417, %v1607
    %v1614 = vadd.f32 %v1421, %v1603
    %v1615 = vadd.f32 %v1423, %v1607
    %v1616 = vadd.f32 %v1427, %v1603
    %v1617 = vadd.f32 %v1429, %v1607
    %v1618 = vadd.f32 %v1433, %v1603
    %v1619 = vadd.f32 %v1435, %v1607
    %v1620 = vadd.f32 %v1439, %v1603
    %v1621 = vadd.f32 %v1441, %v1607
    %v1622 = vadd.f32 %v1445, %v1603
    %v1623 = vadd.f32 %v1447, %v1607
    %v1624 = vadd.f32 %v1451, %v1603
    %v1625 = vadd.f32 %v1453, %v1607
    %v1626 = vadd.f32 %v1457, %v1603
    %v1627 = vadd.f32 %v1459, %v1607
    %v1628 = vadd.f32 %v1463, %v1603
    %v1629 = vadd.f32 %v1465, %v1607
    %v1630 = vadd.f32 %v1469, %v1603
    %v1631 = vadd.f32 %v1471, %v1607
    %v1632 = vadd.f32 %v1475, %v1603
    %v1633 = vadd.f32 %v1477, %v1607
    %v1634 = vadd.f32 %v1481, %v1603
    %v1635 = vadd.f32 %v1483, %v1607
    %v1636 = vadd.f32 %v1487, %v1603
    %v1637 = vadd.f32 %v1489, %v1607
    %v1638 = vadd.f32 %v1493, %v1603
    %v1639 = vadd.f32 %v1495, %v1607
    %v1640 = vadd.f32 %v1499, %v1603
    %v1641 = vadd.f32 %v1501, %v1607
    %v1642 = vadd.f32 %v1505, %v1603
    %v1643 = vadd.f32 %v1507, %v1607
    %v1644 = vadd.f32 %v1511, %v1603
    %v1645 = vadd.f32 %v1513, %v1607
    %v1646 = vadd.f32 %v1517, %v1603
    %v1647 = vadd.f32 %v1519, %v1607
    %v1648 = vadd.f32 %v1523, %v1603
    %v1649 = vadd.f32 %v1525, %v1607
    %v1650 = vadd.f32 %v1529, %v1603
    %v1651 = vadd.f32 %v1531, %v1607
    %v1652 = vadd.f32 %v1535, %v1603
    %v1653 = vadd.f32 %v1537, %v1607
    %v1654 = vadd.f32 %v1541, %v1603
    %v1655 = vadd.f32 %v1543, %v1607
    %v1656 = vadd.f32 %v1547, %v1603
    %v1657 = vadd.f32 %v1549, %v1607
    %v1658 = vadd.f32 %v1553, %v1603
    %v1659 = vadd.f32 %v1555, %v1607
    %v1660 = vadd.f32 %v1559, %v1603
    %v1661 = vadd.f32 %v1561, %v1607
    %v1662 = vadd.f32 %v1565, %v1603
    %v1663 = vadd.f32 %v1567, %v1607
    %v1664 = vadd.f32 %v1571, %v1603
    %v1665 = vadd.f32 %v1573, %v1607
    %v1666 = vadd.f32 %v1577, %v1603
    %v1667 = vadd.f32 %v1579, %v1607
    %v1668 = vadd.f32 %v1583, %v1603
    %v1669 = vadd.f32 %v1585, %v1607
    %v1670 = vadd.f32 %v1589, %v1603
    %v1671 = vadd.f32 %v1591, %v1607
    %v1672 = vadd.f32 %v1595, %v1603
    %v1673 = vadd.f32 %v1597, %v1607
    %v1674 = vtanh.pop %v1610
    %v1675 = vtanh.pop %v1611
    %v1676 = vtanh.pop %v1612
    %v1677 = vtanh.pop %v1613
    %v1678 = vtanh.pop %v1614
    %v1679 = vtanh.pop %v1615
    %v1680 = vtanh.pop %v1616
    %v1681 = vtanh.pop %v1617
    %v1682 = vtanh.pop %v1618
    %v1683 = vtanh.pop %v1619
    %v1684 = vtanh.pop %v1620
    %v1685 = vtanh.pop %v1621
    %v1686 = vtanh.pop %v1622
    %v1687 = vtanh.pop %v1623
    %v1688 = vtanh.pop %v1624
    %v1689 = vtanh.pop %v1625
    %v1690 = vtanh.pop %v1626
    %v1691 = vtanh.pop %v1627
    %v1692 = vtanh.pop %v1628
    %v1693 = vtanh.pop %v1629
    %v1694 = vtanh.pop %v1630
    %v1695 = vtanh.pop %v1631
    %v1696 = vtanh.pop %v1632
    %v1697 = vtanh.pop %v1633
    %v1698 = vtanh.pop %v1634
    %v1699 = vtanh.pop %v1635
    %v1700 = vtanh.pop %v1636
    %v1701 = vtanh.pop %v1637
    %v1702 = vtanh.pop %v1638
    %v1703 = vtanh.pop %v1639
    %v1704 = vtanh.pop %v1640
    %v1705 = vtanh.pop %v1641
    %v1706 = vtanh.pop %v1642
    %v1707 = vtanh.pop %v1643
    %v1708 = vtanh.pop %v1644
    %v1709 = vtanh.pop %v1645
    %v1710 = vtanh.pop %v1646
    %v1711 = vtanh.pop %v1647
    %v1712 = vtanh.pop %v1648
    %v1713 = vtanh.pop %v1649
    %v1714 = vtanh.pop %v1650
    %v1715 = vtanh.pop %v1651
    %v1716 = vtanh.pop %v1652
    %v1717 = vtanh.pop %v1653
    %v1718 = vtanh.pop %v1654
    %v1719 = vtanh.pop %v1655
    %v1720 = vtanh.pop %v1656
    %v1721 = vtanh.pop %v1657
    %v1722 = vtanh.pop %v1658
    %v1723 = vtanh.pop %v1659
    %v1724 = vtanh.pop %v1660
    %v1725 = vtanh.pop %v1661
    %v1726 = vtanh.pop %v1662
    %v1727 = vtanh.pop %v1663
    %v1728 = vtanh.pop %v1664
    %v1729 = vtanh.pop %v1665
    %v1730 = vtanh.pop %v1666
    %v1731 = vtanh.pop %v1667
    %v1732 = vtanh.pop %v1668
    %v1733 = vtanh.pop %v1669
    %v1734 = vtanh.pop %v1670
    %v1735 = vtanh.pop %v1671
    %v1736 = vtanh.pop %v1672
    %v1737 = vtanh.pop %v1673
    %v1738 = vld [vmem:[#allocation5 + $0x600] sm:$0xff]
    %v1739 = vld [vmem:[#allocation5 + $0x610] sm:$0xff]
    %v1740 = vld [vmem:[#allocation5 + $0x620] sm:$0xff]
    %v1741 = vld [vmem:[#allocation5 + $0x630] sm:$0xff]
    %v1742 = vld [vmem:[#allocation5 + $0x640] sm:$0xff]
    %v1743 = vld [vmem:[#allocation5 + $0x650] sm:$0xff]
    %v1744 = vld [vmem:[#allocation5 + $0x660] sm:$0xff]
    %v1745 = vld [vmem:[#allocation5 + $0x670] sm:$0xff]
    %v1746 = vld [vmem:[#allocation5 + $0x680] sm:$0xff]
    %v1747 = vld [vmem:[#allocation5 + $0x690] sm:$0xff]
    %v1748 = vld [vmem:[#allocation5 + $0x6a0] sm:$0xff]
    %v1749 = vld [vmem:[#allocation5 + $0x6b0] sm:$0xff]
    %v1750 = vld [vmem:[#allocation5 + $0x6c0] sm:$0xff]
    %v1751 = vld [vmem:[#allocation5 + $0x6d0] sm:$0xff]
    %v1752 = vld [vmem:[#allocation5 + $0x6e0] sm:$0xff]
    %v1753 = vld [vmem:[#allocation5 + $0x6f0] sm:$0xff]
    %v1754 = vld [vmem:[#allocation5 + $0x700] sm:$0xff]
    %v1755 = vld [vmem:[#allocation5 + $0x710] sm:$0xff]
    %v1756 = vld [vmem:[#allocation5 + $0x720] sm:$0xff]
    %v1757 = vld [vmem:[#allocation5 + $0x730] sm:$0xff]
    %v1758 = vld [vmem:[#allocation5 + $0x740] sm:$0xff]
    %v1759 = vld [vmem:[#allocation5 + $0x750] sm:$0xff]
    %v1760 = vld [vmem:[#allocation5 + $0x760] sm:$0xff]
    %v1761 = vld [vmem:[#allocation5 + $0x770] sm:$0xff]
    %v1762 = vld [vmem:[#allocation5 + $0x780] sm:$0xff]
    %v1763 = vld [vmem:[#allocation5 + $0x790] sm:$0xff]
    %v1764 = vld [vmem:[#allocation5 + $0x7a0] sm:$0xff]
    %v1765 = vld [vmem:[#allocation5 + $0x7b0] sm:$0xff]
    %v1766 = vld [vmem:[#allocation5 + $0x7c0] sm:$0xff]
    %v1767 = vld [vmem:[#allocation5 + $0x7d0] sm:$0xff]
    %v1768 = vld [vmem:[#allocation5 + $0x7e0] sm:$0xff]
    %v1769 = vld [vmem:[#allocation5 + $0x7f0] sm:$0xff]
    %1770 = vmatprep.subr.mxu0 0.0
    %1771 = vmatpush1.msra.mxu0 %v1738
    %1772 = vmatprep.subr.mxu0 0.0
    %1773 = vmatpush1.msra.mxu0 %v1739
    %1774 = vmatprep.subr.mxu0 0.0
    %1775 = vmatpush1.msra.mxu0 %v1740
    %1776 = vmatprep.subr.mxu0 0.0
    %1777 = vmatpush1.msra.mxu0 %v1741
    %1778 = vmatprep.subr.mxu0 0.0
    %1779 = vmatpush1.msra.mxu0 %v1742
    %1780 = vmatprep.subr.mxu0 0.0
    %1781 = vmatpush1.msra.mxu0 %v1743
    %1782 = vmatprep.subr.mxu0 0.0
    %1783 = vmatpush1.msra.mxu0 %v1744
    %1784 = vmatprep.subr.mxu0 0.0
    %1785 = vmatpush1.msra.mxu0 %v1745
    %1786 = vmatprep.subr.mxu0 0.0
    %1787 = vmatpush1.msra.mxu0 %v1746
    %1788 = vmatprep.subr.mxu0 0.0
    %1789 = vmatpush1.msra.mxu0 %v1747
    %1790 = vmatprep.subr.mxu0 0.0
    %1791 = vmatpush1.msra.mxu0 %v1748
    %1792 = vmatprep.subr.mxu0 0.0
    %1793 = vmatpush1.msra.mxu0 %v1749
    %1794 = vmatprep.subr.mxu0 0.0
    %1795 = vmatpush1.msra.mxu0 %v1750
    %1796 = vmatprep.subr.mxu0 0.0
    %1797 = vmatpush1.msra.mxu0 %v1751
    %1798 = vmatprep.subr.mxu0 0.0
    %1799 = vmatpush1.msra.mxu0 %v1752
    %1800 = vmatprep.subr.mxu0 0.0
    %1801 = vmatpush1.msra.mxu0 %v1753
    %1802 = vmatprep.subr.mxu0 0.0
    %1803 = vmatpush1.msra.mxu0 %v1754
    %1804 = vmatprep.subr.mxu0 0.0
    %1805 = vmatpush1.msra.mxu0 %v1755
    %1806 = vmatprep.subr.mxu0 0.0
    %1807 = vmatpush1.msra.mxu0 %v1756
    %1808 = vmatprep.subr.mxu0 0.0
    %1809 = vmatpush1.msra.mxu0 %v1757
    %1810 = vmatprep.subr.mxu0 0.0
    %1811 = vmatpush1.msra.mxu0 %v1758
    %1812 = vmatprep.subr.mxu0 0.0
    %1813 = vmatpush1.msra.mxu0 %v1759
    %1814 = vmatprep.subr.mxu0 0.0
    %1815 = vmatpush1.msra.mxu0 %v1760
    %1816 = vmatprep.subr.mxu0 0.0
    %1817 = vmatpush1.msra.mxu0 %v1761
    %1818 = vmatprep.subr.mxu0 0.0
    %1819 = vmatpush1.msra.mxu0 %v1762
    %1820 = vmatprep.subr.mxu0 0.0
    %1821 = vmatpush1.msra.mxu0 %v1763
    %1822 = vmatprep.subr.mxu0 0.0
    %1823 = vmatpush1.msra.mxu0 %v1764
    %1824 = vmatprep.subr.mxu0 0.0
    %1825 = vmatpush1.msra.mxu0 %v1765
    %1826 = vmatprep.subr.mxu0 0.0
    %1827 = vmatpush1.msra.mxu0 %v1766
    %1828 = vmatprep.subr.mxu0 0.0
    %1829 = vmatpush1.msra.mxu0 %v1767
    %1830 = vmatprep.subr.mxu0 0.0
    %1831 = vmatpush1.msra.mxu0 %v1768
    %1832 = vmatprep.subr.mxu0 0.0
    %1833 = vmatpush1.msra.mxu0 %v1769
    %1834 = vmatprep.mubr.f32.mxu0 %v1675
    %1835 = vmatmul.mubr.f32.gmra.mrb[0].mxu0 %v1674
    %v1836 = vpop.f32.mrb[0].mxu0
    %v1837 = vadd.f32 %v78, %v1836
    %v1838 = vpop.f32.mrb[0].mxu0
    %1839 = vmatprep.mubr.f32.mxu0 %v1677
    %1840 = vmatmul.mubr.f32.gmra.mrb[0].mxu0 %v1676
    %v1841 = vpop.f32.mrb[0].mxu0
    %v1842 = vadd.f32 %v78, %v1841
    %v1843 = vpop.f32.mrb[0].mxu0
    %1844 = vmatprep.mubr.f32.mxu0 %v1679
    %1845 = vmatmul.mubr.f32.gmra.mrb[0].mxu0 %v1678
    %v1846 = vpop.f32.mrb[0].mxu0
    %v1847 = vadd.f32 %v78, %v1846
    %v1848 = vpop.f32.mrb[0].mxu0
    %1849 = vmatprep.mubr.f32.mxu0 %v1681
    %1850 = vmatmul.mubr.f32.gmra.mrb[0].mxu0 %v1680
    %v1851 = vpop.f32.mrb[0].mxu0
    %v1852 = vadd.f32 %v78, %v1851
    %v1853 = vpop.f32.mrb[0].mxu0
    %1854 = vmatprep.mubr.f32.mxu0 %v1683
    %1855 = vmatmul.mubr.f32.gmra.mrb[0].mxu0 %v1682
    %v1856 = vpop.f32.mrb[0].mxu0
    %v1857 = vadd.f32 %v78, %v1856
    %v1858 = vpop.f32.mrb[0].mxu0
    %1859 = vmatprep.mubr.f32.mxu0 %v1685
    %1860 = vmatmul.mubr.f32.gmra.mrb[0].mxu0 %v1684
    %v1861 = vpop.f32.mrb[0].mxu0
    %v1862 = vadd.f32 %v78, %v1861
    %v1863 = vpop.f32.mrb[0].mxu0
    %1864 = vmatprep.mubr.f32.mxu0 %v1687
    %1865 = vmatmul.mubr.f32.gmra.mrb[0].mxu0 %v1686
    %v1866 = vpop.f32.mrb[0].mxu0
    %v1867 = vadd.f32 %v78, %v1866
    %v1868 = vpop.f32.mrb[0].mxu0
    %1869 = vmatprep.mubr.f32.mxu0 %v1689
    %1870 = vmatmul.mubr.f32.gmra.mrb[0].mxu0 %v1688
    %v1871 = vpop.f32.mrb[0].mxu0
    %v1872 = vadd.f32 %v78, %v1871
    %v1873 = vpop.f32.mrb[0].mxu0
    %1874 = vmatprep.mubr.f32.mxu0 %v1691
    %1875 = vmatmul.mubr.f32.gmra.mrb[0].mxu0 %v1690
    %v1876 = vpop.f32.mrb[0].mxu0
    %v1877 = vadd.f32 %v78, %v1876
    %v1878 = vpop.f32.mrb[0].mxu0
    %1879 = vmatprep.mubr.f32.mxu0 %v1693
    %1880 = vmatmul.mubr.f32.gmra.mrb[0].mxu0 %v1692
    %v1881 = vpop.f32.mrb[0].mxu0
    %v1882 = vadd.f32 %v78, %v1881
    %v1883 = vpop.f32.mrb[0].mxu0
    %1884 = vmatprep.mubr.f32.mxu0 %v1695
    %1885 = vmatmul.mubr.f32.gmra.mrb[0].mxu0 %v1694
    %v1886 = vpop.f32.mrb[0].mxu0
    %v1887 = vadd.f32 %v78, %v1886
    %v1888 = vpop.f32.mrb[0].mxu0
    %1889 = vmatprep.mubr.f32.mxu0 %v1697
    %1890 = vmatmul.mubr.f32.gmra.mrb[0].mxu0 %v1696
    %v1891 = vpop.f32.mrb[0].mxu0
    %v1892 = vadd.f32 %v78, %v1891
    %v1893 = vpop.f32.mrb[0].mxu0
    %1894 = vmatprep.mubr.f32.mxu0 %v1699
    %1895 = vmatmul.mubr.f32.gmra.mrb[0].mxu0 %v1698
    %v1896 = vpop.f32.mrb[0].mxu0
    %v1897 = vadd.f32 %v78, %v1896
    %v1898 = vpop.f32.mrb[0].mxu0
    %1899 = vmatprep.mubr.f32.mxu0 %v1701
    %1900 = vmatmul.mubr.f32.gmra.mrb[0].mxu0 %v1700
    %v1901 = vpop.f32.mrb[0].mxu0
    %v1902 = vadd.f32 %v78, %v1901
    %v1903 = vpop.f32.mrb[0].mxu0
    %1904 = vmatprep.mubr.f32.mxu0 %v1703
    %1905 = vmatmul.mubr.f32.gmra.mrb[0].mxu0 %v1702
    %v1906 = vpop.f32.mrb[0].mxu0
    %v1907 = vadd.f32 %v78, %v1906
    %v1908 = vpop.f32.mrb[0].mxu0
    %1909 = vmatprep.mubr.f32.mxu0 %v1705
    %1910 = vmatmul.mubr.f32.gmra.mrb[0].mxu0 %v1704
    %v1911 = vpop.f32.mrb[0].mxu0
    %v1912 = vadd.f32 %v78, %v1911
    %v1913 = vpop.f32.mrb[0].mxu0
    %1914 = vmatprep.mubr.f32.mxu0 %v1707
    %1915 = vmatmul.mubr.f32.gmra.mrb[0].mxu0 %v1706
    %v1916 = vpop.f32.mrb[0].mxu0
    %v1917 = vadd.f32 %v78, %v1916
    %v1918 = vpop.f32.mrb[0].mxu0
    %1919 = vmatprep.mubr.f32.mxu0 %v1709
    %1920 = vmatmul.mubr.f32.gmra.mrb[0].mxu0 %v1708
    %v1921 = vpop.f32.mrb[0].mxu0
    %v1922 = vadd.f32 %v78, %v1921
    %v1923 = vpop.f32.mrb[0].mxu0
    %1924 = vmatprep.mubr.f32.mxu0 %v1711
    %1925 = vmatmul.mubr.f32.gmra.mrb[0].mxu0 %v1710
    %v1926 = vpop.f32.mrb[0].mxu0
    %v1927 = vadd.f32 %v78, %v1926
    %v1928 = vpop.f32.mrb[0].mxu0
    %1929 = vmatprep.mubr.f32.mxu0 %v1713
    %1930 = vmatmul.mubr.f32.gmra.mrb[0].mxu0 %v1712
    %v1931 = vpop.f32.mrb[0].mxu0
    %v1932 = vadd.f32 %v78, %v1931
    %v1933 = vpop.f32.mrb[0].mxu0
    %1934 = vmatprep.mubr.f32.mxu0 %v1715
    %1935 = vmatmul.mubr.f32.gmra.mrb[0].mxu0 %v1714
    %v1936 = vpop.f32.mrb[0].mxu0
    %v1937 = vadd.f32 %v78, %v1936
    %v1938 = vpop.f32.mrb[0].mxu0
    %1939 = vmatprep.mubr.f32.mxu0 %v1717
    %1940 = vmatmul.mubr.f32.gmra.mrb[0].mxu0 %v1716
    %v1941 = vpop.f32.mrb[0].mxu0
    %v1942 = vadd.f32 %v78, %v1941
    %v1943 = vpop.f32.mrb[0].mxu0
    %1944 = vmatprep.mubr.f32.mxu0 %v1719
    %1945 = vmatmul.mubr.f32.gmra.mrb[0].mxu0 %v1718
    %v1946 = vpop.f32.mrb[0].mxu0
    %v1947 = vadd.f32 %v78, %v1946
    %v1948 = vpop.f32.mrb[0].mxu0
    %1949 = vmatprep.mubr.f32.mxu0 %v1721
    %1950 = vmatmul.mubr.f32.gmra.mrb[0].mxu0 %v1720
    %v1951 = vpop.f32.mrb[0].mxu0
    %v1952 = vadd.f32 %v78, %v1951
    %v1953 = vpop.f32.mrb[0].mxu0
    %1954 = vmatprep.mubr.f32.mxu0 %v1723
    %1955 = vmatmul.mubr.f32.gmra.mrb[0].mxu0 %v1722
    %v1956 = vpop.f32.mrb[0].mxu0
    %v1957 = vadd.f32 %v78, %v1956
    %v1958 = vpop.f32.mrb[0].mxu0
    %1959 = vmatprep.mubr.f32.mxu0 %v1725
    %1960 = vmatmul.mubr.f32.gmra.mrb[0].mxu0 %v1724
    %v1961 = vpop.f32.mrb[0].mxu0
    %v1962 = vadd.f32 %v78, %v1961
    %v1963 = vpop.f32.mrb[0].mxu0
    %1964 = vmatprep.mubr.f32.mxu0 %v1727
    %1965 = vmatmul.mubr.f32.gmra.mrb[0].mxu0 %v1726
    %v1966 = vpop.f32.mrb[0].mxu0
    %v1967 = vadd.f32 %v78, %v1966
    %v1968 = vpop.f32.mrb[0].mxu0
    %1969 = vmatprep.mubr.f32.mxu0 %v1729
    %1970 = vmatmul.mubr.f32.gmra.mrb[0].mxu0 %v1728
    %v1971 = vpop.f32.mrb[0].mxu0
    %v1972 = vadd.f32 %v78, %v1971
    %v1973 = vpop.f32.mrb[0].mxu0
    %1974 = vmatprep.mubr.f32.mxu0 %v1731
    %1975 = vmatmul.mubr.f32.gmra.mrb[0].mxu0 %v1730
    %v1976 = vpop.f32.mrb[0].mxu0
    %v1977 = vadd.f32 %v78, %v1976
    %v1978 = vpop.f32.mrb[0].mxu0
    %1979 = vmatprep.mubr.f32.mxu0 %v1733
    %1980 = vmatmul.mubr.f32.gmra.mrb[0].mxu0 %v1732
    %v1981 = vpop.f32.mrb[0].mxu0
    %v1982 = vadd.f32 %v78, %v1981
    %v1983 = vpop.f32.mrb[0].mxu0
    %1984 = vmatprep.mubr.f32.mxu0 %v1735
    %1985 = vmatmul.mubr.f32.gmra.mrb[0].mxu0 %v1734
    %v1986 = vpop.f32.mrb[0].mxu0
    %v1987 = vadd.f32 %v78, %v1986
    %v1988 = vpop.f32.mrb[0].mxu0
    %1989 = vmatprep.mubr.f32.mxu0 %v1737
    %1990 = vmatmul.mubr.f32.gmra.mrb[0].mxu0 %v1736
    %v1991 = vpop.f32.mrb[0].mxu0
    %v1992 = vadd.f32 %v78, %v1991
    %v1993 = vpop.f32.mrb[0].mxu0
    %1994 = vdwg.mxu0
    %1995 = vmax.xlane.f32.xlu0 %v1837
    %v1996 = vpop.xlane.xlu0 %1995
    %1997 = vmax.xlane.f32.xlu0 %v1842
    %v1998 = vpop.xlane.xlu0 %1997
    %1999 = vmax.xlane.f32.xlu0 %v1847
    %v2000 = vpop.xlane.xlu0 %1999
    %2001 = vmax.xlane.f32.xlu0 %v1852
    %v2002 = vpop.xlane.xlu0 %2001
    %2003 = vmax.xlane.f32.xlu0 %v1857
    %v2004 = vpop.xlane.xlu0 %2003
    %2005 = vmax.xlane.f32.xlu0 %v1862
    %v2006 = vpop.xlane.xlu0 %2005
    %2007 = vmax.xlane.f32.xlu0 %v1867
    %v2008 = vpop.xlane.xlu0 %2007
    %2009 = vmax.xlane.f32.xlu0 %v1872
    %v2010 = vpop.xlane.xlu0 %2009
    %2011 = vmax.xlane.f32.xlu0 %v1877
    %v2012 = vpop.xlane.xlu0 %2011
    %2013 = vmax.xlane.f32.xlu0 %v1882
    %v2014 = vpop.xlane.xlu0 %2013
    %2015 = vmax.xlane.f32.xlu0 %v1887
    %v2016 = vpop.xlane.xlu0 %2015
    %2017 = vmax.xlane.f32.xlu0 %v1892
    %v2018 = vpop.xlane.xlu0 %2017
    %2019 = vmax.xlane.f32.xlu0 %v1897
    %v2020 = vpop.xlane.xlu0 %2019
    %2021 = vmax.xlane.f32.xlu0 %v1902
    %v2022 = vpop.xlane.xlu0 %2021
    %2023 = vmax.xlane.f32.xlu0 %v1907
    %v2024 = vpop.xlane.xlu0 %2023
    %2025 = vmax.xlane.f32.xlu0 %v1912
    %v2026 = vpop.xlane.xlu0 %2025
    %2027 = vmax.xlane.f32.xlu0 %v1917
    %v2028 = vpop.xlane.xlu0 %2027
    %2029 = vmax.xlane.f32.xlu0 %v1922
    %v2030 = vpop.xlane.xlu0 %2029
    %2031 = vmax.xlane.f32.xlu0 %v1927
    %v2032 = vpop.xlane.xlu0 %2031
    %2033 = vmax.xlane.f32.xlu0 %v1932
    %v2034 = vpop.xlane.xlu0 %2033
    %2035 = vmax.xlane.f32.xlu0 %v1937
    %v2036 = vpop.xlane.xlu0 %2035
    %2037 = vmax.xlane.f32.xlu0 %v1942
    %v2038 = vpop.xlane.xlu0 %2037
    %2039 = vmax.xlane.f32.xlu0 %v1947
    %v2040 = vpop.xlane.xlu0 %2039
    %2041 = vmax.xlane.f32.xlu0 %v1952
    %v2042 = vpop.xlane.xlu0 %2041
    %2043 = vmax.xlane.f32.xlu0 %v1957
    %v2044 = vpop.xlane.xlu0 %2043
    %2045 = vmax.xlane.f32.xlu0 %v1962
    %v2046 = vpop.xlane.xlu0 %2045
    %2047 = vmax.xlane.f32.xlu0 %v1967
    %v2048 = vpop.xlane.xlu0 %2047
    %2049 = vmax.xlane.f32.xlu0 %v1972
    %v2050 = vpop.xlane.xlu0 %2049
    %2051 = vmax.xlane.f32.xlu0 %v1977
    %v2052 = vpop.xlane.xlu0 %2051
    %2053 = vmax.xlane.f32.xlu0 %v1982
    %v2054 = vpop.xlane.xlu0 %2053
    %2055 = vmax.xlane.f32.xlu0 %v1987
    %v2056 = vpop.xlane.xlu0 %2055
    %2057 = vmax.xlane.f32.xlu0 %v1992
    %v2058 = vpop.xlane.xlu0 %2057
    %v2059 = vsub.f32 %v1837, %v1996
    %v2060 = vsub.f32 %v1842, %v1998
    %v2061 = vsub.f32 %v1847, %v2000
    %v2062 = vsub.f32 %v1852, %v2002
    %v2063 = vsub.f32 %v1857, %v2004
    %v2064 = vsub.f32 %v1862, %v2006
    %v2065 = vsub.f32 %v1867, %v2008
    %v2066 = vsub.f32 %v1872, %v2010
    %v2067 = vsub.f32 %v1877, %v2012
    %v2068 = vsub.f32 %v1882, %v2014
    %v2069 = vsub.f32 %v1887, %v2016
    %v2070 = vsub.f32 %v1892, %v2018
    %v2071 = vsub.f32 %v1897, %v2020
    %v2072 = vsub.f32 %v1902, %v2022
    %v2073 = vsub.f32 %v1907, %v2024
    %v2074 = vsub.f32 %v1912, %v2026
    %v2075 = vsub.f32 %v1917, %v2028
    %v2076 = vsub.f32 %v1922, %v2030
    %v2077 = vsub.f32 %v1927, %v2032
    %v2078 = vsub.f32 %v1932, %v2034
    %v2079 = vsub.f32 %v1937, %v2036
    %v2080 = vsub.f32 %v1942, %v2038
    %v2081 = vsub.f32 %v1947, %v2040
    %v2082 = vsub.f32 %v1952, %v2042
    %v2083 = vsub.f32 %v1957, %v2044
    %v2084 = vsub.f32 %v1962, %v2046
    %v2085 = vsub.f32 %v1967, %v2048
    %v2086 = vsub.f32 %v1972, %v2050
    %v2087 = vsub.f32 %v1977, %v2052
    %v2088 = vsub.f32 %v1982, %v2054
    %v2089 = vsub.f32 %v1987, %v2056
    %v2090 = vsub.f32 %v1992, %v2058
    %v2091 = vld [vmem:[#allocation5 + $0x800] sm:$0xff]
    %v2092 = vld [vmem:[#allocation5 + $0x810] sm:$0xff]
    %v2093 = vld [vmem:[#allocation5 + $0x820] sm:$0xff]
    %v2094 = vld [vmem:[#allocation5 + $0x830] sm:$0xff]
    %v2095 = vld [vmem:[#allocation5 + $0x840] sm:$0xff]
    %v2096 = vld [vmem:[#allocation5 + $0x850] sm:$0xff]
    %v2097 = vld [vmem:[#allocation5 + $0x860] sm:$0xff]
    %v2098 = vld [vmem:[#allocation5 + $0x870] sm:$0xff]
    %v2099 = vld [vmem:[#allocation5 + $0x880] sm:$0xff]
    %v2100 = vld [vmem:[#allocation5 + $0x890] sm:$0xff]
    %v2101 = vld [vmem:[#allocation5 + $0x8a0] sm:$0xff]
    %v2102 = vld [vmem:[#allocation5 + $0x8b0] sm:$0xff]
    %v2103 = vld [vmem:[#allocation5 + $0x8c0] sm:$0xff]
    %v2104 = vld [vmem:[#allocation5 + $0x8d0] sm:$0xff]
    %v2105 = vld [vmem:[#allocation5 + $0x8e0] sm:$0xff]
    %v2106 = vld [vmem:[#allocation5 + $0x8f0] sm:$0xff]
    %v2107 = vmul.f32 %v2059, 1.442695
    %v2108 = vpow.pop %v2107
    %v2109 = vmul.f32 %v2060, 1.442695
    %v2110 = vpow.pop %v2109
    %v2111 = vmul.f32 %v2061, 1.442695
    %v2112 = vpow.pop %v2111
    %v2113 = vmul.f32 %v2062, 1.442695
    %v2114 = vpow.pop %v2113
    %v2115 = vmul.f32 %v2063, 1.442695
    %v2116 = vpow.pop %v2115
    %v2117 = vmul.f32 %v2064, 1.442695
    %v2118 = vpow.pop %v2117
    %v2119 = vmul.f32 %v2065, 1.442695
    %v2120 = vpow.pop %v2119
    %v2121 = vmul.f32 %v2066, 1.442695
    %v2122 = vpow.pop %v2121
    %v2123 = vmul.f32 %v2067, 1.442695
    %v2124 = vpow.pop %v2123
    %v2125 = vmul.f32 %v2068, 1.442695
    %v2126 = vpow.pop %v2125
    %v2127 = vmul.f32 %v2069, 1.442695
    %v2128 = vpow.pop %v2127
    %v2129 = vmul.f32 %v2070, 1.442695
    %v2130 = vpow.pop %v2129
    %v2131 = vmul.f32 %v2071, 1.442695
    %v2132 = vpow.pop %v2131
    %v2133 = vmul.f32 %v2072, 1.442695
    %v2134 = vpow.pop %v2133
    %v2135 = vmul.f32 %v2073, 1.442695
    %v2136 = vpow.pop %v2135
    %v2137 = vmul.f32 %v2074, 1.442695
    %v2138 = vpow.pop %v2137
    %v2139 = vmul.f32 %v2075, 1.442695
    %v2140 = vpow.pop %v2139
    %v2141 = vmul.f32 %v2076, 1.442695
    %v2142 = vpow.pop %v2141
    %v2143 = vmul.f32 %v2077, 1.442695
    %v2144 = vpow.pop %v2143
    %v2145 = vmul.f32 %v2078, 1.442695
    %v2146 = vpow.pop %v2145
    %v2147 = vmul.f32 %v2079, 1.442695
    %v2148 = vpow.pop %v2147
    %v2149 = vmul.f32 %v2080, 1.442695
    %v2150 = vpow.pop %v2149
    %v2151 = vmul.f32 %v2081, 1.442695
    %v2152 = vpow.pop %v2151
    %v2153 = vmul.f32 %v2082, 1.442695
    %v2154 = vpow.pop %v2153
    %v2155 = vmul.f32 %v2083, 1.442695
    %v2156 = vpow.pop %v2155
    %v2157 = vmul.f32 %v2084, 1.442695
    %v2158 = vpow.pop %v2157
    %v2159 = vmul.f32 %v2085, 1.442695
    %v2160 = vpow.pop %v2159
    %v2161 = vmul.f32 %v2086, 1.442695
    %v2162 = vpow.pop %v2161
    %v2163 = vmul.f32 %v2087, 1.442695
    %v2164 = vpow.pop %v2163
    %v2165 = vmul.f32 %v2088, 1.442695
    %v2166 = vpow.pop %v2165
    %v2167 = vmul.f32 %v2089, 1.442695
    %v2168 = vpow.pop %v2167
    %v2169 = vmul.f32 %v2090, 1.442695
    %v2170 = vpow.pop %v2169
    %2171 = vmatprep.subr.mxu0 0.0
    %2172 = vmatpush1.msra.mxu0 %v2091
    %2173 = vmatprep.subr.mxu0 0.0
    %2174 = vmatpush1.msra.mxu0 %v2092
    %2175 = vmatprep.subr.mxu0 0.0
    %2176 = vmatpush1.msra.mxu0 %v2093
    %2177 = vmatprep.subr.mxu0 0.0
    %2178 = vmatpush1.msra.mxu0 %v2094
    %2179 = vmatprep.subr.mxu0 0.0
    %2180 = vmatpush1.msra.mxu0 %v2095
    %2181 = vmatprep.subr.mxu0 0.0
    %2182 = vmatpush1.msra.mxu0 %v2096
    %2183 = vmatprep.subr.mxu0 0.0
    %2184 = vmatpush1.msra.mxu0 %v2097
    %2185 = vmatprep.subr.mxu0 0.0
    %2186 = vmatpush1.msra.mxu0 %v2098
    %2187 = vmatprep.subr.mxu0 0.0
    %2188 = vmatpush1.msra.mxu0 %v2099
    %2189 = vmatprep.subr.mxu0 0.0
    %2190 = vmatpush1.msra.mxu0 %v2100
    %2191 = vmatprep.subr.mxu0 0.0
    %2192 = vmatpush1.msra.mxu0 %v2101
    %2193 = vmatprep.subr.mxu0 0.0
    %2194 = vmatpush1.msra.mxu0 %v2102
    %2195 = vmatprep.subr.mxu0 0.0
    %2196 = vmatpush1.msra.mxu0 %v2103
    %2197 = vmatprep.subr.mxu0 0.0
    %2198 = vmatpush1.msra.mxu0 %v2104
    %2199 = vmatprep.subr.mxu0 0.0
    %2200 = vmatpush1.msra.mxu0 %v2105
    %2201 = vmatprep.subr.mxu0 0.0
    %2202 = vmatpush1.msra.mxu0 %v2106
    %2203 = vmatprep.subr.mxu0 0.0
    %2204 = vmatpush1.msra.mxu0 0.0
    %2205 = vmatprep.subr.mxu0 0.0
    %2206 = vmatpush1.msra.mxu0 0.0
    %2207 = vmatprep.subr.mxu0 0.0
    %2208 = vmatpush1.msra.mxu0 0.0
    %2209 = vmatprep.subr.mxu0 0.0
    %2210 = vmatpush1.msra.mxu0 0.0
    %2211 = vmatprep.subr.mxu0 0.0
    %2212 = vmatpush1.msra.mxu0 0.0
    %2213 = vmatprep.subr.mxu0 0.0
    %2214 = vmatpush1.msra.mxu0 0.0
    %2215 = vmatprep.subr.mxu0 0.0
    %2216 = vmatpush1.msra.mxu0 0.0
    %2217 = vmatprep.subr.mxu0 0.0
    %2218 = vmatpush1.msra.mxu0 0.0
    %2219 = vmatprep.subr.mxu0 0.0
    %2220 = vmatpush1.msra.mxu0 0.0
    %2221 = vmatprep.subr.mxu0 0.0
    %2222 = vmatpush1.msra.mxu0 0.0
    %2223 = vmatprep.subr.mxu0 0.0
    %2224 = vmatpush1.msra.mxu0 0.0
    %2225 = vmatprep.subr.mxu0 0.0
    %2226 = vmatpush1.msra.mxu0 0.0
    %2227 = vmatprep.subr.mxu0 0.0
    %2228 = vmatpush1.msra.mxu0 0.0
    %2229 = vmatprep.subr.mxu0 0.0
    %2230 = vmatpush1.msra.mxu0 0.0
    %2231 = vmatprep.subr.mxu0 0.0
    %2232 = vmatpush1.msra.mxu0 0.0
    %2233 = vmatprep.subr.mxu0 0.0
    %2234 = vmatpush1.msra.mxu0 0.0
    %2235 = vmatprep.mubr.f32.mxu0 0.0
    %2236 = vmatmul.mubr.f32.gmra.mrb[0].mxu0 %v2108
    %v2237 = vpop.f32.mrb[0].mxu0
    %v2238 = vadd.f32 0.0, %v2237
    %v2239 = vpop.f32.mrb[0].mxu0
    %2240 = vmatprep.mubr.f32.mxu0 0.0
    %2241 = vmatmul.mubr.f32.gmra.mrb[0].mxu0 %v2110
    %v2242 = vpop.f32.mrb[0].mxu0
    %v2243 = vadd.f32 0.0, %v2242
    %v2244 = vpop.f32.mrb[0].mxu0
    %2245 = vmatprep.mubr.f32.mxu0 0.0
    %2246 = vmatmul.mubr.f32.gmra.mrb[0].mxu0 %v2112
    %v2247 = vpop.f32.mrb[0].mxu0
    %v2248 = vadd.f32 0.0, %v2247
    %v2249 = vpop.f32.mrb[0].mxu0
    %2250 = vmatprep.mubr.f32.mxu0 0.0
    %2251 = vmatmul.mubr.f32.gmra.mrb[0].mxu0 %v2114
    %v2252 = vpop.f32.mrb[0].mxu0
    %v2253 = vadd.f32 0.0, %v2252
    %v2254 = vpop.f32.mrb[0].mxu0
    %2255 = vmatprep.mubr.f32.mxu0 0.0
    %2256 = vmatmul.mubr.f32.gmra.mrb[0].mxu0 %v2116
    %v2257 = vpop.f32.mrb[0].mxu0
    %v2258 = vadd.f32 0.0, %v2257
    %v2259 = vpop.f32.mrb[0].mxu0
    %2260 = vmatprep.mubr.f32.mxu0 0.0
    %2261 = vmatmul.mubr.f32.gmra.mrb[0].mxu0 %v2118
    %v2262 = vpop.f32.mrb[0].mxu0
    %v2263 = vadd.f32 0.0, %v2262
    %v2264 = vpop.f32.mrb[0].mxu0
    %2265 = vmatprep.mubr.f32.mxu0 0.0
    %2266 = vmatmul.mubr.f32.gmra.mrb[0].mxu0 %v2120
    %v2267 = vpop.f32.mrb[0].mxu0
    %v2268 = vadd.f32 0.0, %v2267
    %v2269 = vpop.f32.mrb[0].mxu0
    %2270 = vmatprep.mubr.f32.mxu0 0.0
    %2271 = vmatmul.mubr.f32.gmra.mrb[0].mxu0 %v2122
    %v2272 = vpop.f32.mrb[0].mxu0
    %v2273 = vadd.f32 0.0, %v2272
    %v2274 = vpop.f32.mrb[0].mxu0
    %2275 = vmatprep.mubr.f32.mxu0 0.0
    %2276 = vmatmul.mubr.f32.gmra.mrb[0].mxu0 %v2124
    %v2277 = vpop.f32.mrb[0].mxu0
    %v2278 = vadd.f32 0.0, %v2277
    %v2279 = vpop.f32.mrb[0].mxu0
    %2280 = vmatprep.mubr.f32.mxu0 0.0
    %2281 = vmatmul.mubr.f32.gmra.mrb[0].mxu0 %v2126
    %v2282 = vpop.f32.mrb[0].mxu0
    %v2283 = vadd.f32 0.0, %v2282
    %v2284 = vpop.f32.mrb[0].mxu0
    %2285 = vmatprep.mubr.f32.mxu0 0.0
    %2286 = vmatmul.mubr.f32.gmra.mrb[0].mxu0 %v2128
    %v2287 = vpop.f32.mrb[0].mxu0
    %v2288 = vadd.f32 0.0, %v2287
    %v2289 = vpop.f32.mrb[0].mxu0
    %2290 = vmatprep.mubr.f32.mxu0 0.0
    %2291 = vmatmul.mubr.f32.gmra.mrb[0].mxu0 %v2130
    %v2292 = vpop.f32.mrb[0].mxu0
    %v2293 = vadd.f32 0.0, %v2292
    %v2294 = vpop.f32.mrb[0].mxu0
    %2295 = vmatprep.mubr.f32.mxu0 0.0
    %2296 = vmatmul.mubr.f32.gmra.mrb[0].mxu0 %v2132
    %v2297 = vpop.f32.mrb[0].mxu0
    %v2298 = vadd.f32 0.0, %v2297
    %v2299 = vpop.f32.mrb[0].mxu0
    %2300 = vmatprep.mubr.f32.mxu0 0.0
    %2301 = vmatmul.mubr.f32.gmra.mrb[0].mxu0 %v2134
    %v2302 = vpop.f32.mrb[0].mxu0
    %v2303 = vadd.f32 0.0, %v2302
    %v2304 = vpop.f32.mrb[0].mxu0
    %2305 = vmatprep.mubr.f32.mxu0 0.0
    %2306 = vmatmul.mubr.f32.gmra.mrb[0].mxu0 %v2136
    %v2307 = vpop.f32.mrb[0].mxu0
    %v2308 = vadd.f32 0.0, %v2307
    %v2309 = vpop.f32.mrb[0].mxu0
    %2310 = vmatprep.mubr.f32.mxu0 0.0
    %2311 = vmatmul.mubr.f32.gmra.mrb[0].mxu0 %v2138
    %v2312 = vpop.f32.mrb[0].mxu0
    %v2313 = vadd.f32 0.0, %v2312
    %v2314 = vpop.f32.mrb[0].mxu0
    %2315 = vmatprep.mubr.f32.mxu0 0.0
    %2316 = vmatmul.mubr.f32.gmra.mrb[0].mxu0 %v2140
    %v2317 = vpop.f32.mrb[0].mxu0
    %v2318 = vadd.f32 0.0, %v2317
    %v2319 = vpop.f32.mrb[0].mxu0
    %2320 = vmatprep.mubr.f32.mxu0 0.0
    %2321 = vmatmul.mubr.f32.gmra.mrb[0].mxu0 %v2142
    %v2322 = vpop.f32.mrb[0].mxu0
    %v2323 = vadd.f32 0.0, %v2322
    %v2324 = vpop.f32.mrb[0].mxu0
    %2325 = vmatprep.mubr.f32.mxu0 0.0
    %2326 = vmatmul.mubr.f32.gmra.mrb[0].mxu0 %v2144
    %v2327 = vpop.f32.mrb[0].mxu0
    %v2328 = vadd.f32 0.0, %v2327
    %v2329 = vpop.f32.mrb[0].mxu0
    %2330 = vmatprep.mubr.f32.mxu0 0.0
    %2331 = vmatmul.mubr.f32.gmra.mrb[0].mxu0 %v2146
    %v2332 = vpop.f32.mrb[0].mxu0
    %v2333 = vadd.f32 0.0, %v2332
    %v2334 = vpop.f32.mrb[0].mxu0
    %2335 = vmatprep.mubr.f32.mxu0 0.0
    %2336 = vmatmul.mubr.f32.gmra.mrb[0].mxu0 %v2148
    %v2337 = vpop.f32.mrb[0].mxu0
    %v2338 = vadd.f32 0.0, %v2337
    %v2339 = vpop.f32.mrb[0].mxu0
    %2340 = vmatprep.mubr.f32.mxu0 0.0
    %2341 = vmatmul.mubr.f32.gmra.mrb[0].mxu0 %v2150
    %v2342 = vpop.f32.mrb[0].mxu0
    %v2343 = vadd.f32 0.0, %v2342
    %v2344 = vpop.f32.mrb[0].mxu0
    %2345 = vmatprep.mubr.f32.mxu0 0.0
    %2346 = vmatmul.mubr.f32.gmra.mrb[0].mxu0 %v2152
    %v2347 = vpop.f32.mrb[0].mxu0
    %v2348 = vadd.f32 0.0, %v2347
    %v2349 = vpop.f32.mrb[0].mxu0
    %2350 = vmatprep.mubr.f32.mxu0 0.0
    %2351 = vmatmul.mubr.f32.gmra.mrb[0].mxu0 %v2154
    %v2352 = vpop.f32.mrb[0].mxu0
    %v2353 = vadd.f32 0.0, %v2352
    %v2354 = vpop.f32.mrb[0].mxu0
    %2355 = vmatprep.mubr.f32.mxu0 0.0
    %2356 = vmatmul.mubr.f32.gmra.mrb[0].mxu0 %v2156
    %v2357 = vpop.f32.mrb[0].mxu0
    %v2358 = vadd.f32 0.0, %v2357
    %v2359 = vpop.f32.mrb[0].mxu0
    %2360 = vmatprep.mubr.f32.mxu0 0.0
    %2361 = vmatmul.mubr.f32.gmra.mrb[0].mxu0 %v2158
    %v2362 = vpop.f32.mrb[0].mxu0
    %v2363 = vadd.f32 0.0, %v2362
    %v2364 = vpop.f32.mrb[0].mxu0
    %2365 = vmatprep.mubr.f32.mxu0 0.0
    %2366 = vmatmul.mubr.f32.gmra.mrb[0].mxu0 %v2160
    %v2367 = vpop.f32.mrb[0].mxu0
    %v2368 = vadd.f32 0.0, %v2367
    %v2369 = vpop.f32.mrb[0].mxu0
    %2370 = vmatprep.mubr.f32.mxu0 0.0
    %2371 = vmatmul.mubr.f32.gmra.mrb[0].mxu0 %v2162
    %v2372 = vpop.f32.mrb[0].mxu0
    %v2373 = vadd.f32 0.0, %v2372
    %v2374 = vpop.f32.mrb[0].mxu0
    %2375 = vmatprep.mubr.f32.mxu0 0.0
    %2376 = vmatmul.mubr.f32.gmra.mrb[0].mxu0 %v2164
    %v2377 = vpop.f32.mrb[0].mxu0
    %v2378 = vadd.f32 0.0, %v2377
    %v2379 = vpop.f32.mrb[0].mxu0
    %2380 = vmatprep.mubr.f32.mxu0 0.0
    %2381 = vmatmul.mubr.f32.gmra.mrb[0].mxu0 %v2166
    %v2382 = vpop.f32.mrb[0].mxu0
    %v2383 = vadd.f32 0.0, %v2382
    %v2384 = vpop.f32.mrb[0].mxu0
    %2385 = vmatprep.mubr.f32.mxu0 0.0
    %2386 = vmatmul.mubr.f32.gmra.mrb[0].mxu0 %v2168
    %v2387 = vpop.f32.mrb[0].mxu0
    %v2388 = vadd.f32 0.0, %v2387
    %v2389 = vpop.f32.mrb[0].mxu0
    %2390 = vmatprep.mubr.f32.mxu0 0.0
    %2391 = vmatmul.mubr.f32.gmra.mrb[0].mxu0 %v2170
    %v2392 = vpop.f32.mrb[0].mxu0
    %v2393 = vadd.f32 0.0, %v2392
    %v2394 = vpop.f32.mrb[0].mxu0
    %2395 = vdwg.mxu0
    %v2396 = vlog2.pop %v2238
    %v2397 = vmul.f32 %v2396, 0.6931472
    %v2398 = vlog2.pop %v2243
    %v2399 = vmul.f32 %v2398, 0.6931472
    %v2400 = vlog2.pop %v2248
    %v2401 = vmul.f32 %v2400, 0.6931472
    %v2402 = vlog2.pop %v2253
    %v2403 = vmul.f32 %v2402, 0.6931472
    %v2404 = vlog2.pop %v2258
    %v2405 = vmul.f32 %v2404, 0.6931472
    %v2406 = vlog2.pop %v2263
    %v2407 = vmul.f32 %v2406, 0.6931472
    %v2408 = vlog2.pop %v2268
    %v2409 = vmul.f32 %v2408, 0.6931472
    %v2410 = vlog2.pop %v2273
    %v2411 = vmul.f32 %v2410, 0.6931472
    %v2412 = vlog2.pop %v2278
    %v2413 = vmul.f32 %v2412, 0.6931472
    %v2414 = vlog2.pop %v2283
    %v2415 = vmul.f32 %v2414, 0.6931472
    %v2416 = vlog2.pop %v2288
    %v2417 = vmul.f32 %v2416, 0.6931472
    %v2418 = vlog2.pop %v2293
    %v2419 = vmul.f32 %v2418, 0.6931472
    %v2420 = vlog2.pop %v2298
    %v2421 = vmul.f32 %v2420, 0.6931472
    %v2422 = vlog2.pop %v2303
    %v2423 = vmul.f32 %v2422, 0.6931472
    %v2424 = vlog2.pop %v2308
    %v2425 = vmul.f32 %v2424, 0.6931472
    %v2426 = vlog2.pop %v2313
    %v2427 = vmul.f32 %v2426, 0.6931472
    %v2428 = vlog2.pop %v2318
    %v2429 = vmul.f32 %v2428, 0.6931472
    %v2430 = vlog2.pop %v2323
    %v2431 = vmul.f32 %v2430, 0.6931472
    %v2432 = vlog2.pop %v2328
    %v2433 = vmul.f32 %v2432, 0.6931472
    %v2434 = vlog2.pop %v2333
    %v2435 = vmul.f32 %v2434, 0.6931472
    %v2436 = vlog2.pop %v2338
    %v2437 = vmul.f32 %v2436, 0.6931472
    %v2438 = vlog2.pop %v2343
    %v2439 = vmul.f32 %v2438, 0.6931472
    %v2440 = vlog2.pop %v2348
    %v2441 = vmul.f32 %v2440, 0.6931472
    %v2442 = vlog2.pop %v2353
    %v2443 = vmul.f32 %v2442, 0.6931472
    %v2444 = vlog2.pop %v2358
    %v2445 = vmul.f32 %v2444, 0.6931472
    %v2446 = vlog2.pop %v2363
    %v2447 = vmul.f32 %v2446, 0.6931472
    %v2448 = vlog2.pop %v2368
    %v2449 = vmul.f32 %v2448, 0.6931472
    %v2450 = vlog2.pop %v2373
    %v2451 = vmul.f32 %v2450, 0.6931472
    %v2452 = vlog2.pop %v2378
    %v2453 = vmul.f32 %v2452, 0.6931472
    %v2454 = vlog2.pop %v2383
    %v2455 = vmul.f32 %v2454, 0.6931472
    %v2456 = vlog2.pop %v2388
    %v2457 = vmul.f32 %v2456, 0.6931472
    %v2458 = vlog2.pop %v2393
    %v2459 = vmul.f32 %v2458, 0.6931472
    %v2460 = vsub.f32 %v2059, %v2397
    %v2461 = vsub.f32 %v2060, %v2399
    %v2462 = vsub.f32 %v2061, %v2401
    %v2463 = vsub.f32 %v2062, %v2403
    %v2464 = vsub.f32 %v2063, %v2405
    %v2465 = vsub.f32 %v2064, %v2407
    %v2466 = vsub.f32 %v2065, %v2409
    %v2467 = vsub.f32 %v2066, %v2411
    %v2468 = vsub.f32 %v2067, %v2413
    %v2469 = vsub.f32 %v2068, %v2415
    %v2470 = vsub.f32 %v2069, %v2417
    %v2471 = vsub.f32 %v2070, %v2419
    %v2472 = vsub.f32 %v2071, %v2421
    %v2473 = vsub.f32 %v2072, %v2423
    %v2474 = vsub.f32 %v2073, %v2425
    %v2475 = vsub.f32 %v2074, %v2427
    %v2476 = vsub.f32 %v2075, %v2429
    %v2477 = vsub.f32 %v2076, %v2431
    %v2478 = vsub.f32 %v2077, %v2433
    %v2479 = vsub.f32 %v2078, %v2435
    %v2480 = vsub.f32 %v2079, %v2437
    %v2481 = vsub.f32 %v2080, %v2439
    %v2482 = vsub.f32 %v2081, %v2441
    %v2483 = vsub.f32 %v2082, %v2443
    %v2484 = vsub.f32 %v2083, %v2445
    %v2485 = vsub.f32 %v2084, %v2447
    %v2486 = vsub.f32 %v2085, %v2449
    %v2487 = vsub.f32 %v2086, %v2451
    %v2488 = vsub.f32 %v2087, %v2453
    %v2489 = vsub.f32 %v2088, %v2455
    %v2490 = vsub.f32 %v2089, %v2457
    %v2491 = vsub.f32 %v2090, %v2459
    %2492 = vst [vmem:[#allocation7] sm:$0xff] %v2460
    %2493 = vst [vmem:[#allocation7 + $0x8] sm:$0xff] %v2461
    %2494 = vst [vmem:[#allocation7 + $0x10] sm:$0xff] %v2462
    %2495 = vst [vmem:[#allocation7 + $0x18] sm:$0xff] %v2463
    %2496 = vst [vmem:[#allocation7 + $0x20] sm:$0xff] %v2464
    %2497 = vst [vmem:[#allocation7 + $0x28] sm:$0xff] %v2465
    %2498 = vst [vmem:[#allocation7 + $0x30] sm:$0xff] %v2466
    %2499 = vst [vmem:[#allocation7 + $0x38] sm:$0xff] %v2467
    %2500 = vst [vmem:[#allocation7 + $0x40] sm:$0xff] %v2468
    %2501 = vst [vmem:[#allocation7 + $0x48] sm:$0xff] %v2469
    %2502 = vst [vmem:[#allocation7 + $0x50] sm:$0xff] %v2470
    %2503 = vst [vmem:[#allocation7 + $0x58] sm:$0xff] %v2471
    %2504 = vst [vmem:[#allocation7 + $0x60] sm:$0xff] %v2472
    %2505 = vst [vmem:[#allocation7 + $0x68] sm:$0xff] %v2473
    %2506 = vst [vmem:[#allocation7 + $0x70] sm:$0xff] %v2474
    %2507 = vst [vmem:[#allocation7 + $0x78] sm:$0xff] %v2475
    %2508 = vst [vmem:[#allocation7 + $0x80] sm:$0xff] %v2476
    %2509 = vst [vmem:[#allocation7 + $0x88] sm:$0xff] %v2477
    %2510 = vst [vmem:[#allocation7 + $0x90] sm:$0xff] %v2478
    %2511 = vst [vmem:[#allocation7 + $0x98] sm:$0xff] %v2479
    %2512 = vst [vmem:[#allocation7 + $0xa0] sm:$0xff] %v2480
    %2513 = vst [vmem:[#allocation7 + $0xa8] sm:$0xff] %v2481
    %2514 = vst [vmem:[#allocation7 + $0xb0] sm:$0xff] %v2482
    %2515 = vst [vmem:[#allocation7 + $0xb8] sm:$0xff] %v2483
    %2516 = vst [vmem:[#allocation7 + $0xc0] sm:$0xff] %v2484
    %2517 = vst [vmem:[#allocation7 + $0xc8] sm:$0xff] %v2485
    %2518 = vst [vmem:[#allocation7 + $0xd0] sm:$0xff] %v2486
    %2519 = vst [vmem:[#allocation7 + $0xd8] sm:$0xff] %v2487
    %2520 = vst [vmem:[#allocation7 + $0xe0] sm:$0xff] %v2488
    %2521 = vst [vmem:[#allocation7 + $0xe8] sm:$0xff] %v2489
    %2522 = vst [vmem:[#allocation7 + $0xf0] sm:$0xff] %v2490
    %2523 = vst [vmem:[#allocation7 + $0xf8] sm:$0xff] %v2491
    // Predicated region
    $region18: #{tpu_custom_call.1} parent=1 // pred_check
      _
    $region19: #{tpu_custom_call.1} parent=1 // pred_check_branch
      %2525 = sbr.rel (0) target = $region21
    $region20: #{tpu_custom_call.1} parent=1 // pred_region
      %s2527 = ssub.s32 4096, 4096
      %2528 = vsyncadd [#allocation4], %s2527
      %s2529 = sshll.u32 [#allocation7], 4
      %s2530 = int_to_ptr.vmem [resolvable:$true] %s2529
      %2535 = dma.vmem_to_hbm [thread:$0]  %s2530, 4096, %s2, [#allocation4], 128, 128, 8
    $region21: #{tpu_custom_call.1} parent=1 // pred_fallthru
      _
    // Predicated region
    $region22: #{tpu_custom_call.1} parent=1 // pred_check
      _
    $region23: #{tpu_custom_call.1} parent=1 // pred_check_branch
      %2537 = sbr.rel (0) target = $region25
    $region24: #{tpu_custom_call.1} parent=1 // pred_region
      %2538 = dma.done [#allocation4], 4096
    $region25: #{tpu_custom_call.1} parent=1 // pred_fallthru
      _
    %2539 = vsyncpa [#allocation3], 1
    %2540 = vsyncpa [#allocation6], 1
    %2541 = vsyncpa [#allocation4], 1

</llo_original>
